<compile_context>
chip_gen: v6e
topology: v6e:2x2x1
jax: 0.10.0
libtpu: 0.0.40
codegen_flags: <defaults>
</compile_context>

<pallas_src>
import jax
import jax.numpy as jnp
from jax import lax
from jax.experimental import pallas as pl
from jax.experimental.pallas import tpu as pltpu


def _mlp_kernel(x_ref,
                w1_ref, b1_ref,
                w2_ref, b2_ref,
                w3_ref, b3_ref,
                w4_ref, b4_ref,
                o_ref):
    bf16 = jnp.bfloat16
    # Layers 1-3: bf16 inputs on the MXU, f32 accumulation; bias + ReLU in f32.
    h = jnp.dot(x_ref[...].astype(bf16), w1_ref[...],
                preferred_element_type=jnp.float32)
    h = jnp.maximum(h + b1_ref[...], 0.0)
    h = jnp.dot(h.astype(bf16), w2_ref[...],
                preferred_element_type=jnp.float32)
    h = jnp.maximum(h + b2_ref[...], 0.0)
    h = jnp.dot(h.astype(bf16), w3_ref[...],
                preferred_element_type=jnp.float32)
    h = jnp.maximum(h + b3_ref[...], 0.0)
    # Layer 4: (1,128) x (TB,128)^T -> (1,TB).  Lane-dense logits row (batch on
    # lanes) => full-lane stores; one thin MXU pass instead of a 1-column one.
    logits = lax.dot_general(
        w4_ref[...], h.astype(bf16),
        dimension_numbers=(((1,), (1,)), ((), ())),
        preferred_element_type=jnp.float32)
    logits = logits + b4_ref[...]
    # Sigmoid: exp + approximate reciprocal both run on the EUP slot.
    # TODO(synk): swap for exact reciprocal / stable two-branch sigmoid if
    # tighter-than-~2^-12 accuracy on the probability is ever required.
    o_ref[...] = pl.reciprocal(1.0 + jnp.exp(-logits), approx=True)


def _round_up(n, m):
    return (n + m - 1) // m * m


def _pallas_forward(x_pad, w1, b1, w2, b2, w3, b3, w4_row, b4, *,
                    tb, n_tiles, dim_semantics, weight_pipeline_mode):
    """Builds and runs the pallas_call for one configuration."""
    b_pad = n_tiles * tb

    def resident(shape):
        # Whole-array block with a constant index_map: fetched once, stays
        # VMEM-resident across all batch tiles.
        kwargs = {}
        if weight_pipeline_mode is not None:
            kwargs["pipeline_mode"] = weight_pipeline_mode
        return pl.BlockSpec(shape, lambda i: (0,) * len(shape), **kwargs)

    param_bytes = ((160 * 256 + 256 * 256 + 256 * 128 + 128) * 2  # bf16 weights
                   + (256 + 256 + 128 + 1) * 4)                   # f32 biases
    cost = pl.CostEstimate(
        flops=2 * b_pad * (160 * 256 + 256 * 256 + 256 * 128 + 128),
        transcendentals=2 * b_pad,
        bytes_accessed=b_pad * 160 * 4 + param_bytes + b_pad * 4,
    )

    return pl.pallas_call(
        _mlp_kernel,
        out_shape=jax.ShapeDtypeStruct((1, b_pad), jnp.float32),
        grid=(n_tiles,),
        in_specs=[
            pl.BlockSpec((tb, 160), lambda i: (i, 0)),
            resident(w1.shape), resident(b1.shape),
            resident(w2.shape), resident(b2.shape),
            resident(w3.shape), resident(b3.shape),
            resident(w4_row.shape), resident(b4.shape),
        ],
        out_specs=pl.BlockSpec((1, tb), lambda i: (0, i)),
        compiler_params=pltpu.CompilerParams(
            dimension_semantics=dim_semantics,
            vmem_limit_bytes=32 * 1024 * 1024),
        cost_estimate=cost,
    )(x_pad, w1, b1, w2, b2, w3, b3, w4_row, b4)


def naive_linear_net(x, params, *, max_tb=2048):
    """x: [B, 160] float32. params: f32 weights [in,out], biases [1,out]."""
    B, F = x.shape
    assert F == 160, f"expected 160 input features, got {F}"
    assert max_tb % 256 == 0, "max_tb must be a multiple of 256"

    bf16 = jnp.bfloat16
    w1, b1 = params["w1"].astype(bf16), params["b1"]
    w2, b2 = params["w2"].astype(bf16), params["b2"]
    w3, b3 = params["w3"].astype(bf16), params["b3"]
    w4_row = params["w4"].reshape(1, 128).astype(bf16)  # [128,1] -> (1,128) row
    b4 = params["b4"]

    # Batch tile: multiple of 256 so MXU M-passes stay full; capped at max_tb.
    tb = min(max_tb, _round_up(B, 256))
    b_pad = _round_up(B, tb)
    if b_pad != B:
        x = jnp.pad(x, ((0, b_pad - B), (0, 0)))
    n_tiles = b_pad // tb

    core_parallel = getattr(pltpu, "CORE_PARALLEL", None)
    buffered = getattr(pl, "Buffered", None)

    # Primary config: CORE_PARALLEL batch axis (v7x dual-TC sharding; harmless
    # elsewhere) + single-buffered resident weights.  Fallback: the previously
    # validated ("parallel", double-buffered) configuration.
    configs = []
    if core_parallel is not None or buffered is not None:
        configs.append(dict(
            dim_semantics=(core_parallel if core_parallel is not None
                           else "parallel",),
            weight_pipeline_mode=(buffered(1) if buffered is not None
                                  else None)))
    configs.append(dict(dim_semantics=("parallel",),
                        weight_pipeline_mode=None))

    out = None
    last_err = None
    for cfg in configs:
        try:
            out = jax.block_until_ready(_pallas_forward(
                x, w1, b1, w2, b2, w3, b3, w4_row, b4,
                tb=tb, n_tiles=n_tiles, **cfg))
            break
        except Exception as e:  # lowering/compile not supported on this chip
            last_err = e
            out = None
    if out is None:
        raise last_err

    # (1, b_pad) lane-dense result -> (B, 1)
    return out.reshape(b_pad, 1)[:B]


def init_params(key):
    """Deterministic init mimicking nn.Linear's U(-1/sqrt(in), 1/sqrt(in))."""
    dims = [(160, 256), (256, 256), (256, 128), (128, 1)]
    params = {}
    for i, (fan_in, fan_out) in enumerate(dims, start=1):
        key, kw, kb = jax.random.split(key, 3)
        bound = 1.0 / (fan_in ** 0.5)
        # stored as [in, out] (transposed relative to torch's [out, in])
        params[f"w{i}"] = jax.random.uniform(
            kw, (fan_in, fan_out), jnp.float32, minval=-bound, maxval=bound)
        params[f"b{i}"] = jax.random.uniform(
            kb, (1, fan_out), jnp.float32, minval=-bound, maxval=bound)
    return params


def _reference(x, p):
    h = jnp.maximum(x @ p["w1"] + p["b1"], 0.0)
    h = jnp.maximum(h @ p["w2"] + p["b2"], 0.0)
    h = jnp.maximum(h @ p["w3"] + p["b3"], 0.0)
    return jax.nn.sigmoid(h @ p["w4"] + p["b4"])


if __name__ == "__main__":
    key = jax.random.PRNGKey(0)
    key, kx, kx2 = jax.random.split(key, 3)
    params = init_params(key)

    # Small-batch case (single 256-row tile, most rows padding).
    B = 8
    x = jax.random.normal(kx, (B, 160), dtype=jnp.float32)
    out = jax.block_until_ready(naive_linear_net(x, params))
    expected = _reference(x, params)
    assert out.shape == (B, 1)
    # bf16 matmul inputs (f32 accumulate) + approx reciprocal in the sigmoid:
    # ~1e-2-class error vs. the f32 reference.
    assert jnp.allclose(out, expected, atol=2e-2, rtol=2e-2), (
        float(jnp.max(jnp.abs(out - expected))))

    # Larger batch exercising TB=2048 tiling + padding (grid=(2,)).
    B2 = 2500
    x2 = jax.random.normal(kx2, (B2, 160), dtype=jnp.float32)
    out2 = jax.block_until_ready(naive_linear_net(x2, params))
    expected2 = _reference(x2, params)
    assert out2.shape == (B2, 1)
    assert jnp.allclose(out2, expected2, atol=2e-2, rtol=2e-2), (
        float(jnp.max(jnp.abs(out2 - expected2))))

    print("KERNEL_OK")
</pallas_src>

<mosaic_0001>
module attributes {stable_mosaic.version = 11 : i64} {
  func.func @_mlp_kernel(%arg0: i32, %arg1: memref<256x160xf32, #tpu.memory_space<vmem>>, %arg2: memref<160x256xbf16, #tpu.memory_space<vmem>>, %arg3: memref<1x256xf32, #tpu.memory_space<vmem>>, %arg4: memref<256x256xbf16, #tpu.memory_space<vmem>>, %arg5: memref<1x256xf32, #tpu.memory_space<vmem>>, %arg6: memref<256x128xbf16, #tpu.memory_space<vmem>>, %arg7: memref<1x128xf32, #tpu.memory_space<vmem>>, %arg8: memref<1x128xbf16, #tpu.memory_space<vmem>>, %arg9: memref<1x1xf32, #tpu.memory_space<vmem>>, %arg10: memref<1x256xf32, #tpu.memory_space<vmem>>) attributes {dimension_semantics = [#tpu.dimension_semantics<core_parallel>], iteration_bounds = array<i64: 1>, scalar_prefetch = 0 : i64, scratch_operands = 0 : i64, tpu.core_type = #tpu.core_type<tc>, window_params = [{transform_indices = @transform_0, window_bounds = array<i64: 256, 160>}, {pipeline_mode = #tpu.pipeline_mode<synchronous>, transform_indices = @transform_1, window_bounds = array<i64: 160, 256>}, {pipeline_mode = #tpu.pipeline_mode<synchronous>, transform_indices = @transform_2, window_bounds = array<i64: 1, 256>}, {pipeline_mode = #tpu.pipeline_mode<synchronous>, transform_indices = @transform_3, window_bounds = array<i64: 256, 256>}, {pipeline_mode = #tpu.pipeline_mode<synchronous>, transform_indices = @transform_4, window_bounds = array<i64: 1, 256>}, {pipeline_mode = #tpu.pipeline_mode<synchronous>, transform_indices = @transform_5, window_bounds = array<i64: 256, 128>}, {pipeline_mode = #tpu.pipeline_mode<synchronous>, transform_indices = @transform_6, window_bounds = array<i64: 1, 128>}, {pipeline_mode = #tpu.pipeline_mode<synchronous>, transform_indices = @transform_7, window_bounds = array<i64: 1, 128>}, {pipeline_mode = #tpu.pipeline_mode<synchronous>, transform_indices = @transform_8, window_bounds = array<i64: 1, 1>}, {transform_indices = @transform_9, window_bounds = array<i64: 1, 256>}]} {
    %c0 = arith.constant 0 : index
    %c0_0 = arith.constant 0 : index
    %0 = vector.load %arg1[%c0, %c0_0] : memref<256x160xf32, #tpu.memory_space<vmem>>, vector<256x160xf32>
    %1 = arith.truncf %0 : vector<256x160xf32> to vector<256x160xbf16>
    %c0_1 = arith.constant 0 : index
    %c0_2 = arith.constant 0 : index
    %2 = vector.load %arg2[%c0_1, %c0_2] : memref<160x256xbf16, #tpu.memory_space<vmem>>, vector<160x256xbf16>
    %cst = arith.constant dense<0.000000e+00> : vector<256x256xf32>
    %3 = tpu.matmul %1, %2, %cst {dimension_numbers = #tpu.dot_dimension_numbers<[1], [0], [0], [1], [0, 0, 1, 1], [], []>} : vector<256x160xbf16>, vector<160x256xbf16>, vector<256x256xf32> -> vector<256x256xf32>
    %c0_3 = arith.constant 0 : index
    %c0_4 = arith.constant 0 : index
    %4 = vector.load %arg3[%c0_3, %c0_4] : memref<1x256xf32, #tpu.memory_space<vmem>>, vector<1x256xf32>
    %5 = vector.broadcast %4 : vector<1x256xf32> to vector<256x256xf32>
    %6 = arith.addf %3, %5 : vector<256x256xf32>
    %cst_5 = arith.constant 0.000000e+00 : f32
    %7 = vector.broadcast %cst_5 : f32 to vector<256x256xf32>
    %8 = arith.maximumf %6, %7 : vector<256x256xf32>
    %9 = arith.truncf %8 : vector<256x256xf32> to vector<256x256xbf16>
    %c0_6 = arith.constant 0 : index
    %c0_7 = arith.constant 0 : index
    %10 = vector.load %arg4[%c0_6, %c0_7] : memref<256x256xbf16, #tpu.memory_space<vmem>>, vector<256x256xbf16>
    %cst_8 = arith.constant dense<0.000000e+00> : vector<256x256xf32>
    %11 = tpu.matmul %9, %10, %cst_8 {dimension_numbers = #tpu.dot_dimension_numbers<[1], [0], [0], [1], [0, 0, 1, 1], [], []>} : vector<256x256xbf16>, vector<256x256xbf16>, vector<256x256xf32> -> vector<256x256xf32>
    %c0_9 = arith.constant 0 : index
    %c0_10 = arith.constant 0 : index
    %12 = vector.load %arg5[%c0_9, %c0_10] : memref<1x256xf32, #tpu.memory_space<vmem>>, vector<1x256xf32>
    %13 = vector.broadcast %12 : vector<1x256xf32> to vector<256x256xf32>
    %14 = arith.addf %11, %13 : vector<256x256xf32>
    %cst_11 = arith.constant 0.000000e+00 : f32
    %15 = vector.broadcast %cst_11 : f32 to vector<256x256xf32>
    %16 = arith.maximumf %14, %15 : vector<256x256xf32>
    %17 = arith.truncf %16 : vector<256x256xf32> to vector<256x256xbf16>
    %c0_12 = arith.constant 0 : index
    %c0_13 = arith.constant 0 : index
    %18 = vector.load %arg6[%c0_12, %c0_13] : memref<256x128xbf16, #tpu.memory_space<vmem>>, vector<256x128xbf16>
    %cst_14 = arith.constant dense<0.000000e+00> : vector<256x128xf32>
    %19 = tpu.matmul %17, %18, %cst_14 {dimension_numbers = #tpu.dot_dimension_numbers<[1], [0], [0], [1], [0, 0, 1, 1], [], []>} : vector<256x256xbf16>, vector<256x128xbf16>, vector<256x128xf32> -> vector<256x128xf32>
    %c0_15 = arith.constant 0 : index
    %c0_16 = arith.constant 0 : index
    %20 = vector.load %arg7[%c0_15, %c0_16] : memref<1x128xf32, #tpu.memory_space<vmem>>, vector<1x128xf32>
    %21 = vector.broadcast %20 : vector<1x128xf32> to vector<256x128xf32>
    %22 = arith.addf %19, %21 : vector<256x128xf32>
    %cst_17 = arith.constant 0.000000e+00 : f32
    %23 = vector.broadcast %cst_17 : f32 to vector<256x128xf32>
    %24 = arith.maximumf %22, %23 : vector<256x128xf32>
    %c0_18 = arith.constant 0 : index
    %c0_19 = arith.constant 0 : index
    %25 = vector.load %arg8[%c0_18, %c0_19] : memref<1x128xbf16, #tpu.memory_space<vmem>>, vector<1x128xbf16>
    %26 = arith.truncf %24 : vector<256x128xf32> to vector<256x128xbf16>
    %cst_20 = arith.constant dense<0.000000e+00> : vector<1x256xf32>
    %27 = tpu.matmul %25, %26, %cst_20 {dimension_numbers = #tpu.dot_dimension_numbers<[1], [1], [0], [0], [0, 0, 1, 0], [], []>} : vector<1x128xbf16>, vector<256x128xbf16>, vector<1x256xf32> -> vector<1x256xf32>
    %c0_21 = arith.constant 0 : index
    %c0_22 = arith.constant 0 : index
    %28 = vector.load %arg9[%c0_21, %c0_22] : memref<1x1xf32, #tpu.memory_space<vmem>>, vector<1x1xf32>
    %29 = vector.broadcast %28 : vector<1x1xf32> to vector<1x256xf32>
    %30 = arith.addf %27, %29 : vector<1x256xf32>
    %cst_23 = arith.constant 0.000000e+00 : f32
    %31 = vector.broadcast %cst_23 : f32 to vector<1x256xf32>
    %32 = arith.subf %31, %30 : vector<1x256xf32>
    %33 = math.exp %32 : vector<1x256xf32>
    %cst_24 = arith.constant 1.000000e+00 : f32
    %34 = vector.broadcast %cst_24 : f32 to vector<1x256xf32>
    %35 = arith.addf %34, %33 : vector<1x256xf32>
    %36 = tpu.reciprocal %35 {approx = true} : vector<1x256xf32> -> vector<1x256xf32>
    %c0_25 = arith.constant 0 : index
    %c0_26 = arith.constant 0 : index
    %37 = vector.load %arg10[%c0_25, %c0_26] : memref<1x256xf32, #tpu.memory_space<vmem>>, vector<1x256xf32>
    tpu.vector_store %arg10[%c0_25, %c0_26], %36 {strides = array<i32>} : memref<1x256xf32, #tpu.memory_space<vmem>>, vector<1x256xf32>,
    return
  }
  func.func @transform_0(%arg0: i32) -> (i32, i32) {
    %c0_i32 = arith.constant 0 : i32
    %c0_i32_0 = arith.constant 0 : i32
    return %arg0, %c0_i32 : i32, i32
  }
  func.func @transform_1(%arg0: i32) -> (i32, i32) {
    %c0_i32 = arith.constant 0 : i32
    %c0_i32_0 = arith.constant 0 : i32
    %c0_i32_1 = arith.constant 0 : i32
    return %c0_i32, %c0_i32_0 : i32, i32
  }
  func.func @transform_2(%arg0: i32) -> (i32, i32) {
    %c0_i32 = arith.constant 0 : i32
    %c0_i32_0 = arith.constant 0 : i32
    %c0_i32_1 = arith.constant 0 : i32
    return %c0_i32, %c0_i32_0 : i32, i32
  }
  func.func @transform_3(%arg0: i32) -> (i32, i32) {
    %c0_i32 = arith.constant 0 : i32
    %c0_i32_0 = arith.constant 0 : i32
    %c0_i32_1 = arith.constant 0 : i32
    return %c0_i32, %c0_i32_0 : i32, i32
  }
  func.func @transform_4(%arg0: i32) -> (i32, i32) {
    %c0_i32 = arith.constant 0 : i32
    %c0_i32_0 = arith.constant 0 : i32
    %c0_i32_1 = arith.constant 0 : i32
    return %c0_i32, %c0_i32_0 : i32, i32
  }
  func.func @transform_5(%arg0: i32) -> (i32, i32) {
    %c0_i32 = arith.constant 0 : i32
    %c0_i32_0 = arith.constant 0 : i32
    %c0_i32_1 = arith.constant 0 : i32
    return %c0_i32, %c0_i32_0 : i32, i32
  }
  func.func @transform_6(%arg0: i32) -> (i32, i32) {
    %c0_i32 = arith.constant 0 : i32
    %c0_i32_0 = arith.constant 0 : i32
    %c0_i32_1 = arith.constant 0 : i32
    return %c0_i32, %c0_i32_0 : i32, i32
  }
  func.func @transform_7(%arg0: i32) -> (i32, i32) {
    %c0_i32 = arith.constant 0 : i32
    %c0_i32_0 = arith.constant 0 : i32
    %c0_i32_1 = arith.constant 0 : i32
    return %c0_i32, %c0_i32_0 : i32, i32
  }
  func.func @transform_8(%arg0: i32) -> (i32, i32) {
    %c0_i32 = arith.constant 0 : i32
    %c0_i32_0 = arith.constant 0 : i32
    %c0_i32_1 = arith.constant 0 : i32
    return %c0_i32, %c0_i32_0 : i32, i32
  }
  func.func @transform_9(%arg0: i32) -> (i32, i32) {
    %c0_i32 = arith.constant 0 : i32
    %c0_i32_0 = arith.constant 0 : i32
    return %c0_i32, %arg0 : i32, i32
  }
}

module attributes {stable_mosaic.version = 11 : i64} {
  func.func @_mlp_kernel(%arg0: i32, %arg1: memref<256x160xf32, #tpu.memory_space<vmem>>, %arg2: memref<160x256xbf16, #tpu.memory_space<vmem>>, %arg3: memref<1x256xf32, #tpu.memory_space<vmem>>, %arg4: memref<256x256xbf16, #tpu.memory_space<vmem>>, %arg5: memref<1x256xf32, #tpu.memory_space<vmem>>, %arg6: memref<256x128xbf16, #tpu.memory_space<vmem>>, %arg7: memref<1x128xf32, #tpu.memory_space<vmem>>, %arg8: memref<1x128xbf16, #tpu.memory_space<vmem>>, %arg9: memref<1x1xf32, #tpu.memory_space<vmem>>, %arg10: memref<1x256xf32, #tpu.memory_space<vmem>>) attributes {dimension_semantics = [#tpu.dimension_semantics<parallel>], iteration_bounds = array<i64: 1>, scalar_prefetch = 0 : i64, scratch_operands = 0 : i64, tpu.core_type = #tpu.core_type<tc>, window_params = [{transform_indices = @transform_0, window_bounds = array<i64: 256, 160>}, {pipeline_mode = #tpu.pipeline_mode<synchronous>, transform_indices = @transform_1, window_bounds = array<i64: 160, 256>}, {pipeline_mode = #tpu.pipeline_mode<synchronous>, transform_indices = @transform_2, window_bounds = array<i64: 1, 256>}, {pipeline_mode = #tpu.pipeline_mode<synchronous>, transform_indices = @transform_3, window_bounds = array<i64: 256, 256>}, {pipeline_mode = #tpu.pipeline_mode<synchronous>, transform_indices = @transform_4, window_bounds = array<i64: 1, 256>}, {pipeline_mode = #tpu.pipeline_mode<synchronous>, transform_indices = @transform_5, window_bounds = array<i64: 256, 128>}, {pipeline_mode = #tpu.pipeline_mode<synchronous>, transform_indices = @transform_6, window_bounds = array<i64: 1, 128>}, {pipeline_mode = #tpu.pipeline_mode<synchronous>, transform_indices = @transform_7, window_bounds = array<i64: 1, 128>}, {pipeline_mode = #tpu.pipeline_mode<synchronous>, transform_indices = @transform_8, window_bounds = array<i64: 1, 1>}, {transform_indices = @transform_9, window_bounds = array<i64: 1, 256>}]} {
    %c0 = arith.constant 0 : index
    %c0_0 = arith.constant 0 : index
    %0 = vector.load %arg1[%c0, %c0_0] : memref<256x160xf32, #tpu.memory_space<vmem>>, vector<256x160xf32>
    %1 = arith.truncf %0 : vector<256x160xf32> to vector<256x160xbf16>
    %c0_1 = arith.constant 0 : index
    %c0_2 = arith.constant 0 : index
    %2 = vector.load %arg2[%c0_1, %c0_2] : memref<160x256xbf16, #tpu.memory_space<vmem>>, vector<160x256xbf16>
    %cst = arith.constant dense<0.000000e+00> : vector<256x256xf32>
    %3 = tpu.matmul %1, %2, %cst {dimension_numbers = #tpu.dot_dimension_numbers<[1], [0], [0], [1], [0, 0, 1, 1], [], []>} : vector<256x160xbf16>, vector<160x256xbf16>, vector<256x256xf32> -> vector<256x256xf32>
    %c0_3 = arith.constant 0 : index
    %c0_4 = arith.constant 0 : index
    %4 = vector.load %arg3[%c0_3, %c0_4] : memref<1x256xf32, #tpu.memory_space<vmem>>, vector<1x256xf32>
    %5 = vector.broadcast %4 : vector<1x256xf32> to vector<256x256xf32>
    %6 = arith.addf %3, %5 : vector<256x256xf32>
    %cst_5 = arith.constant 0.000000e+00 : f32
    %7 = vector.broadcast %cst_5 : f32 to vector<256x256xf32>
    %8 = arith.maximumf %6, %7 : vector<256x256xf32>
    %9 = arith.truncf %8 : vector<256x256xf32> to vector<256x256xbf16>
    %c0_6 = arith.constant 0 : index
    %c0_7 = arith.constant 0 : index
    %10 = vector.load %arg4[%c0_6, %c0_7] : memref<256x256xbf16, #tpu.memory_space<vmem>>, vector<256x256xbf16>
    %cst_8 = arith.constant dense<0.000000e+00> : vector<256x256xf32>
    %11 = tpu.matmul %9, %10, %cst_8 {dimension_numbers = #tpu.dot_dimension_numbers<[1], [0], [0], [1], [0, 0, 1, 1], [], []>} : vector<256x256xbf16>, vector<256x256xbf16>, vector<256x256xf32> -> vector<256x256xf32>
    %c0_9 = arith.constant 0 : index
    %c0_10 = arith.constant 0 : index
    %12 = vector.load %arg5[%c0_9, %c0_10] : memref<1x256xf32, #tpu.memory_space<vmem>>, vector<1x256xf32>
    %13 = vector.broadcast %12 : vector<1x256xf32> to vector<256x256xf32>
    %14 = arith.addf %11, %13 : vector<256x256xf32>
    %cst_11 = arith.constant 0.000000e+00 : f32
    %15 = vector.broadcast %cst_11 : f32 to vector<256x256xf32>
    %16 = arith.maximumf %14, %15 : vector<256x256xf32>
    %17 = arith.truncf %16 : vector<256x256xf32> to vector<256x256xbf16>
    %c0_12 = arith.constant 0 : index
    %c0_13 = arith.constant 0 : index
    %18 = vector.load %arg6[%c0_12, %c0_13] : memref<256x128xbf16, #tpu.memory_space<vmem>>, vector<256x128xbf16>
    %cst_14 = arith.constant dense<0.000000e+00> : vector<256x128xf32>
    %19 = tpu.matmul %17, %18, %cst_14 {dimension_numbers = #tpu.dot_dimension_numbers<[1], [0], [0], [1], [0, 0, 1, 1], [], []>} : vector<256x256xbf16>, vector<256x128xbf16>, vector<256x128xf32> -> vector<256x128xf32>
    %c0_15 = arith.constant 0 : index
    %c0_16 = arith.constant 0 : index
    %20 = vector.load %arg7[%c0_15, %c0_16] : memref<1x128xf32, #tpu.memory_space<vmem>>, vector<1x128xf32>
    %21 = vector.broadcast %20 : vector<1x128xf32> to vector<256x128xf32>
    %22 = arith.addf %19, %21 : vector<256x128xf32>
    %cst_17 = arith.constant 0.000000e+00 : f32
    %23 = vector.broadcast %cst_17 : f32 to vector<256x128xf32>
    %24 = arith.maximumf %22, %23 : vector<256x128xf32>
    %c0_18 = arith.constant 0 : index
    %c0_19 = arith.constant 0 : index
    %25 = vector.load %arg8[%c0_18, %c0_19] : memref<1x128xbf16, #tpu.memory_space<vmem>>, vector<1x128xbf16>
    %26 = arith.truncf %24 : vector<256x128xf32> to vector<256x128xbf16>
    %cst_20 = arith.constant dense<0.000000e+00> : vector<1x256xf32>
    %27 = tpu.matmul %25, %26, %cst_20 {dimension_numbers = #tpu.dot_dimension_numbers<[1], [1], [0], [0], [0, 0, 1, 0], [], []>} : vector<1x128xbf16>, vector<256x128xbf16>, vector<1x256xf32> -> vector<1x256xf32>
    %c0_21 = arith.constant 0 : index
    %c0_22 = arith.constant 0 : index
    %28 = vector.load %arg9[%c0_21, %c0_22] : memref<1x1xf32, #tpu.memory_space<vmem>>, vector<1x1xf32>
    %29 = vector.broadcast %28 : vector<1x1xf32> to vector<1x256xf32>
    %30 = arith.addf %27, %29 : vector<1x256xf32>
    %cst_23 = arith.constant 0.000000e+00 : f32
    %31 = vector.broadcast %cst_23 : f32 to vector<1x256xf32>
    %32 = arith.subf %31, %30 : vector<1x256xf32>
    %33 = math.exp %32 : vector<1x256xf32>
    %cst_24 = arith.constant 1.000000e+00 : f32
    %34 = vector.broadcast %cst_24 : f32 to vector<1x256xf32>
    %35 = arith.addf %34, %33 : vector<1x256xf32>
    %36 = tpu.reciprocal %35 {approx = true} : vector<1x256xf32> -> vector<1x256xf32>
    %c0_25 = arith.constant 0 : index
    %c0_26 = arith.constant 0 : index
    %37 = vector.load %arg10[%c0_25, %c0_26] : memref<1x256xf32, #tpu.memory_space<vmem>>, vector<1x256xf32>
    tpu.vector_store %arg10[%c0_25, %c0_26], %36 {strides = array<i32>} : memref<1x256xf32, #tpu.memory_space<vmem>>, vector<1x256xf32>,
    return
  }
  func.func @transform_0(%arg0: i32) -> (i32, i32) {
    %c0_i32 = arith.constant 0 : i32
    %c0_i32_0 = arith.constant 0 : i32
    return %arg0, %c0_i32 : i32, i32
  }
  func.func @transform_1(%arg0: i32) -> (i32, i32) {
    %c0_i32 = arith.constant 0 : i32
    %c0_i32_0 = arith.constant 0 : i32
    %c0_i32_1 = arith.constant 0 : i32
    return %c0_i32, %c0_i32_0 : i32, i32
  }
  func.func @transform_2(%arg0: i32) -> (i32, i32) {
    %c0_i32 = arith.constant 0 : i32
    %c0_i32_0 = arith.constant 0 : i32
    %c0_i32_1 = arith.constant 0 : i32
    return %c0_i32, %c0_i32_0 : i32, i32
  }
  func.func @transform_3(%arg0: i32) -> (i32, i32) {
    %c0_i32 = arith.constant 0 : i32
    %c0_i32_0 = arith.constant 0 : i32
    %c0_i32_1 = arith.constant 0 : i32
    return %c0_i32, %c0_i32_0 : i32, i32
  }
  func.func @transform_4(%arg0: i32) -> (i32, i32) {
    %c0_i32 = arith.constant 0 : i32
    %c0_i32_0 = arith.constant 0 : i32
    %c0_i32_1 = arith.constant 0 : i32
    return %c0_i32, %c0_i32_0 : i32, i32
  }
  func.func @transform_5(%arg0: i32) -> (i32, i32) {
    %c0_i32 = arith.constant 0 : i32
    %c0_i32_0 = arith.constant 0 : i32
    %c0_i32_1 = arith.constant 0 : i32
    return %c0_i32, %c0_i32_0 : i32, i32
  }
  func.func @transform_6(%arg0: i32) -> (i32, i32) {
    %c0_i32 = arith.constant 0 : i32
    %c0_i32_0 = arith.constant 0 : i32
    %c0_i32_1 = arith.constant 0 : i32
    return %c0_i32, %c0_i32_0 : i32, i32
  }
  func.func @transform_7(%arg0: i32) -> (i32, i32) {
    %c0_i32 = arith.constant 0 : i32
    %c0_i32_0 = arith.constant 0 : i32
    %c0_i32_1 = arith.constant 0 : i32
    return %c0_i32, %c0_i32_0 : i32, i32
  }
  func.func @transform_8(%arg0: i32) -> (i32, i32) {
    %c0_i32 = arith.constant 0 : i32
    %c0_i32_0 = arith.constant 0 : i32
    %c0_i32_1 = arith.constant 0 : i32
    return %c0_i32, %c0_i32_0 : i32, i32
  }
  func.func @transform_9(%arg0: i32) -> (i32, i32) {
    %c0_i32 = arith.constant 0 : i32
    %c0_i32_0 = arith.constant 0 : i32
    return %c0_i32, %arg0 : i32, i32
  }
}

</mosaic_0001>

<llo_original>
// kernel: tpu_custom_call.1
$region0: #{tpu_custom_call.1}
  #allocation0 [shape = 'u32[]', space=smem, size = 0x4, offset = 0x4, fixed_abs, tag = 'smem constant byte address 0x4 - core index']
  #allocation1 [shape = 'u32[144,128]{1,0:T(1,128)}', space=vmem, size = 0x12000, scoped, tag = 'internal scratch']
  #allocation2 [shape = 'f32[1,1]{1,0:T(1,128)S(1)}', space=vmem, size = 0x200, scoped, tag = 'scoped memory for tpu_custom_call.1']
  %s0 = inlined_call_operand.vmem [shape: f32[256,160], index: 0, kind: input, shape index: {}]
  %s1 = inlined_call_operand.vmem [shape: bf16[160,256], index: 1, kind: input, shape index: {}]
  %s2 = inlined_call_operand.vmem [shape: f32[1,256], index: 2, kind: input, shape index: {}]
  %s3 = inlined_call_operand.vmem [shape: bf16[256,256], index: 3, kind: input, shape index: {}]
  %s4 = inlined_call_operand.vmem [shape: f32[1,256], index: 4, kind: input, shape index: {}]
  %s5 = inlined_call_operand.vmem [shape: bf16[256,128], index: 5, kind: input, shape index: {}]
  %s6 = inlined_call_operand.vmem [shape: f32[1,128], index: 6, kind: input, shape index: {}]
  %s7 = inlined_call_operand.vmem [shape: bf16[1,128], index: 7, kind: input, shape index: {}]
  %s8 = inlined_call_operand.<no memory space> [shape: f32[1,1], index: 8, kind: input, shape index: {}]
  %s9 = inlined_call_operand.hbm [shape: f32[1,256], index: 9, kind: output, shape index: {}]
  %s10 = sld [smem:[#allocation0]]
  $region46: #{tpu_custom_call.1} parent=0
    _
  %s12 = ssub.s32 1, %s10
  %s13 = scalar_select 0, %s12, %s10
  %v14 = vstv %s8
  %15 = vst [vmem:[#allocation2] sm:$0x1] %v14
  $region1: #{tpu_custom_call.1} parent=0
    #allocation3 [shape = 'u8[1024]{0}', space=vmem, size = 0x400, scoped, tag = 'output window, operand 0, single buffered']
    #allocation4 [shape = 's32[1]{0}', space=sflag, size = 0x4, scoped, tag = 'scoped memory for tpu_custom_call.1']
    %16 = vsyncpa [#allocation4], 0
    // Predicated region
    $region2: #{tpu_custom_call.1} parent=1 // pred_check
      _
    $region3: #{tpu_custom_call.1} parent=1 // pred_check_branch
      %18 = sbr.rel (0) target = $region5
    $region4: #{tpu_custom_call.1} parent=1 // pred_region
      %s19 = smul.u32 32, %s13
      %p20 = scmp.lt.s32.totalorder %s19, 31
      %s21 = scalar_select %p20, %s19, 31
      %s22 = smul.addr %s21, 2
      %s23 = smul.addr %s22, 8
      %s24 = scalar_lea.vmem %s0, %s23
      %s25 = smul.u32 32, %s13
    $region5: #{tpu_custom_call.1} parent=1 // pred_fallthru
      _
    // Predicated region
    $region6: #{tpu_custom_call.1} parent=1 // pred_check
      _
    $region7: #{tpu_custom_call.1} parent=1 // pred_check_branch
      %27 = sbr.rel (0) target = $region9
    $region8: #{tpu_custom_call.1} parent=1 // pred_region
      _
    $region9: #{tpu_custom_call.1} parent=1 // pred_fallthru
      _
    // Predicated region
    $region10: #{tpu_custom_call.1} parent=1 // pred_check
      _
    $region11: #{tpu_custom_call.1} parent=1 // pred_check_branch
      %29 = sbr.rel (0) target = $region13
    $region12: #{tpu_custom_call.1} parent=1 // pred_region
      _
    $region13: #{tpu_custom_call.1} parent=1 // pred_fallthru
      _
    // Predicated region
    $region14: #{tpu_custom_call.1} parent=1 // pred_check
      _
    $region15: #{tpu_custom_call.1} parent=1 // pred_check_branch
      %31 = sbr.rel (0) target = $region17
    $region16: #{tpu_custom_call.1} parent=1 // pred_region
      _
    $region17: #{tpu_custom_call.1} parent=1 // pred_fallthru
      _
    // Predicated region
    $region18: #{tpu_custom_call.1} parent=1 // pred_check
      _
    $region19: #{tpu_custom_call.1} parent=1 // pred_check_branch
      %33 = sbr.rel (0) target = $region21
    $region20: #{tpu_custom_call.1} parent=1 // pred_region
      _
    $region21: #{tpu_custom_call.1} parent=1 // pred_fallthru
      _
    // Predicated region
    $region22: #{tpu_custom_call.1} parent=1 // pred_check
      _
    $region23: #{tpu_custom_call.1} parent=1 // pred_check_branch
      %35 = sbr.rel (0) target = $region25
    $region24: #{tpu_custom_call.1} parent=1 // pred_region
      _
    $region25: #{tpu_custom_call.1} parent=1 // pred_fallthru
      _
    // Predicated region
    $region26: #{tpu_custom_call.1} parent=1 // pred_check
      _
    $region27: #{tpu_custom_call.1} parent=1 // pred_check_branch
      %37 = sbr.rel (0) target = $region29
    $region28: #{tpu_custom_call.1} parent=1 // pred_region
      _
    $region29: #{tpu_custom_call.1} parent=1 // pred_fallthru
      _
    // Predicated region
    $region30: #{tpu_custom_call.1} parent=1 // pred_check
      _
    $region31: #{tpu_custom_call.1} parent=1 // pred_check_branch
      %39 = sbr.rel (0) target = $region33
    $region32: #{tpu_custom_call.1} parent=1 // pred_region
      _
    $region33: #{tpu_custom_call.1} parent=1 // pred_fallthru
      _
    // Predicated region
    $region34: #{tpu_custom_call.1} parent=1 // pred_check
      _
    $region35: #{tpu_custom_call.1} parent=1 // pred_check_branch
      %41 = sbr.rel (0) target = $region37
    $region36: #{tpu_custom_call.1} parent=1 // pred_region
      _
    $region37: #{tpu_custom_call.1} parent=1 // pred_fallthru
      _
    %s42 = smul.u32 32, %s13
    %p43 = scmp.lt.s32.totalorder %s42, 31
    %s44 = scalar_select %p43, %s42, 31
    %s45 = smul.addr %s44, 2
    %s46 = smul.addr %s45, 8
    %s47 = scalar_lea.vmem %s0, %s46
    %s48 = smul.u32 32, %s13
    %p49 = scmp.lt.s32.totalorder %s48, 31
    %s50 = scalar_select %p49, %s48, 31
    %s51 = smul.addr %s50, 2
    %s52 = smul.addr %s51, 8
    %s53 = scalar_lea.vmem %s0, %s52
    %s54 = smul.u32 32, %s13
    %s55 = smul.u32 2, %s13
    %v57 = vld [vmem:[%s53] sm:$0xff]
    %v58 = vld [vmem:[%s53 + $0x8] sm:$0xff]
    %v59 = vld [vmem:[%s53 + $0x10] sm:$0xff]
    %v60 = vld [vmem:[%s53 + $0x18] sm:$0xff]
    %v61 = vld [vmem:[%s53 + $0x20] sm:$0xff]
    %v62 = vld [vmem:[%s53 + $0x28] sm:$0xff]
    %v63 = vld [vmem:[%s53 + $0x30] sm:$0xff]
    %v64 = vld [vmem:[%s53 + $0x38] sm:$0xff]
    %v65 = vld [vmem:[%s53 + $0x40] sm:$0xff]
    %v66 = vld [vmem:[%s53 + $0x48] sm:$0xff]
    %v67 = vld [vmem:[%s53 + $0x50] sm:$0xff]
    %v68 = vld [vmem:[%s53 + $0x58] sm:$0xff]
    %v69 = vld [vmem:[%s53 + $0x60] sm:$0xff]
    %v70 = vld [vmem:[%s53 + $0x68] sm:$0xff]
    %v71 = vld [vmem:[%s53 + $0x70] sm:$0xff]
    %v72 = vld [vmem:[%s53 + $0x78] sm:$0xff]
    %v73 = vld [vmem:[%s53 + $0x80] sm:$0xff]
    %v74 = vld [vmem:[%s53 + $0x88] sm:$0xff]
    %v75 = vld [vmem:[%s53 + $0x90] sm:$0xff]
    %v76 = vld [vmem:[%s53 + $0x98] sm:$0xff]
    %v77 = vld [vmem:[%s53 + $0xa0] sm:$0xff]
    %v78 = vld [vmem:[%s53 + $0xa8] sm:$0xff]
    %v79 = vld [vmem:[%s53 + $0xb0] sm:$0xff]
    %v80 = vld [vmem:[%s53 + $0xb8] sm:$0xff]
    %v81 = vld [vmem:[%s53 + $0xc0] sm:$0xff]
    %v82 = vld [vmem:[%s53 + $0xc8] sm:$0xff]
    %v83 = vld [vmem:[%s53 + $0xd0] sm:$0xff]
    %v84 = vld [vmem:[%s53 + $0xd8] sm:$0xff]
    %v85 = vld [vmem:[%s53 + $0xe0] sm:$0xff]
    %v86 = vld [vmem:[%s53 + $0xe8] sm:$0xff]
    %v87 = vld [vmem:[%s53 + $0xf0] sm:$0xff]
    %v88 = vld [vmem:[%s53 + $0xf8] sm:$0xff]
    %v89 = vld [vmem:[%s53 + $0x100] sm:$0xff]
    %v90 = vld [vmem:[%s53 + $0x108] sm:$0xff]
    %v91 = vld [vmem:[%s53 + $0x110] sm:$0xff]
    %v92 = vld [vmem:[%s53 + $0x118] sm:$0xff]
    %v93 = vld [vmem:[%s53 + $0x120] sm:$0xff]
    %v94 = vld [vmem:[%s53 + $0x128] sm:$0xff]
    %v95 = vld [vmem:[%s53 + $0x130] sm:$0xff]
    %v96 = vld [vmem:[%s53 + $0x138] sm:$0xff]
    %v97 = vld [vmem:[%s53 + $0x140] sm:$0xff]
    %v98 = vld [vmem:[%s53 + $0x148] sm:$0xff]
    %v99 = vld [vmem:[%s53 + $0x150] sm:$0xff]
    %v100 = vld [vmem:[%s53 + $0x158] sm:$0xff]
    %v101 = vld [vmem:[%s53 + $0x160] sm:$0xff]
    %v102 = vld [vmem:[%s53 + $0x168] sm:$0xff]
    %v103 = vld [vmem:[%s53 + $0x170] sm:$0xff]
    %v104 = vld [vmem:[%s53 + $0x178] sm:$0xff]
    %v105 = vld [vmem:[%s53 + $0x180] sm:$0xff]
    %v106 = vld [vmem:[%s53 + $0x188] sm:$0xff]
    %v107 = vld [vmem:[%s53 + $0x190] sm:$0xff]
    %v108 = vld [vmem:[%s53 + $0x198] sm:$0xff]
    %v109 = vld [vmem:[%s53 + $0x1a0] sm:$0xff]
    %v110 = vld [vmem:[%s53 + $0x1a8] sm:$0xff]
    %v111 = vld [vmem:[%s53 + $0x1b0] sm:$0xff]
    %v112 = vld [vmem:[%s53 + $0x1b8] sm:$0xff]
    %v113 = vld [vmem:[%s53 + $0x1c0] sm:$0xff]
    %v114 = vld [vmem:[%s53 + $0x1c8] sm:$0xff]
    %v115 = vld [vmem:[%s53 + $0x1d0] sm:$0xff]
    %v116 = vld [vmem:[%s53 + $0x1d8] sm:$0xff]
    %v117 = vld [vmem:[%s53 + $0x1e0] sm:$0xff]
    %v118 = vld [vmem:[%s53 + $0x1e8] sm:$0xff]
    %v119 = vld [vmem:[%s53 + $0x1f0] sm:$0xff]
    %v120 = vld [vmem:[%s53 + $0x1f8] sm:$0xff]
    %v121 = vpack.c.bf16 %v59, %v57
    %v122 = vpack.c.bf16 %v60, %v58
    %v123 = vpack.c.bf16 %v63, %v61
    %v124 = vpack.c.bf16 %v64, %v62
    %v125 = vpack.c.bf16 %v67, %v65
    %v126 = vpack.c.bf16 %v68, %v66
    %v127 = vpack.c.bf16 %v71, %v69
    %v128 = vpack.c.bf16 %v72, %v70
    %v129 = vpack.c.bf16 %v75, %v73
    %v130 = vpack.c.bf16 %v76, %v74
    %v131 = vpack.c.bf16 %v79, %v77
    %v132 = vpack.c.bf16 %v80, %v78
    %v133 = vpack.c.bf16 %v83, %v81
    %v134 = vpack.c.bf16 %v84, %v82
    %v135 = vpack.c.bf16 %v87, %v85
    %v136 = vpack.c.bf16 %v88, %v86
    %v137 = vpack.c.bf16 %v91, %v89
    %v138 = vpack.c.bf16 %v92, %v90
    %v139 = vpack.c.bf16 %v95, %v93
    %v140 = vpack.c.bf16 %v96, %v94
    %v141 = vpack.c.bf16 %v99, %v97
    %v142 = vpack.c.bf16 %v100, %v98
    %v143 = vpack.c.bf16 %v103, %v101
    %v144 = vpack.c.bf16 %v104, %v102
    %v145 = vpack.c.bf16 %v107, %v105
    %v146 = vpack.c.bf16 %v108, %v106
    %v147 = vpack.c.bf16 %v111, %v109
    %v148 = vpack.c.bf16 %v112, %v110
    %v149 = vpack.c.bf16 %v115, %v113
    %v150 = vpack.c.bf16 %v116, %v114
    %v151 = vpack.c.bf16 %v119, %v117
    %v152 = vpack.c.bf16 %v120, %v118
    %v153 = vld [vmem:[%s1] sm:$0xff]
    %v154 = vld [vmem:[%s1 + $0x8] sm:$0xff]
    %v155 = vld [vmem:[%s1 + $0x10] sm:$0xff]
    %v156 = vld [vmem:[%s1 + $0x18] sm:$0xff]
    %v157 = vld [vmem:[%s1 + $0x20] sm:$0xff]
    %v158 = vld [vmem:[%s1 + $0x28] sm:$0xff]
    %v159 = vld [vmem:[%s1 + $0x30] sm:$0xff]
    %v160 = vld [vmem:[%s1 + $0x38] sm:$0xff]
    %v161 = vld [vmem:[%s1 + $0x40] sm:$0xff]
    %v162 = vld [vmem:[%s1 + $0x48] sm:$0xff]
    %v163 = vld [vmem:[%s1 + $0x50] sm:$0xff]
    %v164 = vld [vmem:[%s1 + $0x58] sm:$0xff]
    %v165 = vld [vmem:[%s1 + $0x60] sm:$0xff]
    %v166 = vld [vmem:[%s1 + $0x68] sm:$0xff]
    %v167 = vld [vmem:[%s1 + $0x70] sm:$0xff]
    %v168 = vld [vmem:[%s1 + $0x78] sm:$0xff]
    %v169 = vld [vmem:[%s1 + $0x80] sm:$0xff]
    %v170 = vld [vmem:[%s1 + $0x88] sm:$0xff]
    %v171 = vld [vmem:[%s1 + $0x90] sm:$0xff]
    %v172 = vld [vmem:[%s1 + $0x98] sm:$0xff]
    %v173 = vld [vmem:[%s2] sm:$0x3]
    %v175 = vlaneseq
    %v176 = vshrl.u32 %v175, 7
    %v177 = vsub.s32 0, %v176
    %v178 = vrot.slane %v173, %v177
    %v179 = vlaneseq
    %v180 = vshrl.u32 %v179, 7
    %v181 = vsub.s32 1, %v180
    %v182 = vrot.slane %v173, %v181
    %v205 = vunpack.c.l.b16 %v153
    %v206 = vunpack.c.h.b16 %v153
    %v207 = vunpack.c.l.b16 %v154
    %v208 = vunpack.c.h.b16 %v154
    %v209 = vunpack.c.l.b16 %v155
    %v210 = vunpack.c.h.b16 %v155
    %v211 = vunpack.c.l.b16 %v156
    %v212 = vunpack.c.h.b16 %v156
    %v213 = vunpack.c.l.b16 %v157
    %v214 = vunpack.c.h.b16 %v157
    %v215 = vunpack.c.l.b16 %v158
    %v216 = vunpack.c.h.b16 %v158
    %v217 = vunpack.c.l.b16 %v159
    %v218 = vunpack.c.h.b16 %v159
    %v219 = vunpack.c.l.b16 %v160
    %v220 = vunpack.c.h.b16 %v160
    %v221 = vunpack.c.l.b16 %v161
    %v222 = vunpack.c.h.b16 %v161
    %v223 = vunpack.c.l.b16 %v162
    %v224 = vunpack.c.h.b16 %v162
    %v225 = vunpack.c.l.b16 %v163
    %v226 = vunpack.c.h.b16 %v163
    %v227 = vunpack.c.l.b16 %v164
    %v228 = vunpack.c.h.b16 %v164
    %v229 = vunpack.c.l.b16 %v165
    %v230 = vunpack.c.h.b16 %v165
    %v231 = vunpack.c.l.b16 %v166
    %v232 = vunpack.c.h.b16 %v166
    %v233 = vunpack.c.l.b16 %v167
    %v234 = vunpack.c.h.b16 %v167
    %v235 = vunpack.c.l.b16 %v168
    %v236 = vunpack.c.h.b16 %v168
    %v237 = vunpack.c.l.b16 %v169
    %v238 = vunpack.c.h.b16 %v169
    %v239 = vunpack.c.l.b16 %v170
    %v240 = vunpack.c.h.b16 %v170
    %v241 = vunpack.c.l.b16 %v171
    %v242 = vunpack.c.h.b16 %v171
    %v243 = vunpack.c.l.b16 %v172
    %v244 = vunpack.c.h.b16 %v172
    %v245 = vpack.c.b16 %v207, %v205
    %v246 = vpack.c.b16 %v208, %v206
    %v247 = vpack.c.b16 %v211, %v209
    %v248 = vpack.c.b16 %v212, %v210
    %v249 = vpack.c.b16 %v215, %v213
    %v250 = vpack.c.b16 %v216, %v214
    %v251 = vpack.c.b16 %v219, %v217
    %v252 = vpack.c.b16 %v220, %v218
    %v253 = vpack.c.b16 %v223, %v221
    %v254 = vpack.c.b16 %v224, %v222
    %v255 = vpack.c.b16 %v227, %v225
    %v256 = vpack.c.b16 %v228, %v226
    %v257 = vpack.c.b16 %v231, %v229
    %v258 = vpack.c.b16 %v232, %v230
    %v259 = vpack.c.b16 %v235, %v233
    %v260 = vpack.c.b16 %v236, %v234
    %v261 = vpack.c.b16 %v239, %v237
    %v262 = vpack.c.b16 %v240, %v238
    %v263 = vpack.c.b16 %v243, %v241
    %v264 = vpack.c.b16 %v244, %v242
    %vm285 = vcmask 261120
    %v287 = vsel %vm285, %v122, 0
    %v290 = vsel %vm285, %v124, 0
    %v293 = vsel %vm285, %v126, 0
    %v296 = vsel %vm285, %v128, 0
    %v299 = vsel %vm285, %v130, 0
    %v302 = vsel %vm285, %v132, 0
    %v305 = vsel %vm285, %v134, 0
    %v308 = vsel %vm285, %v136, 0
    %v311 = vsel %vm285, %v138, 0
    %v314 = vsel %vm285, %v140, 0
    %v317 = vsel %vm285, %v142, 0
    %v320 = vsel %vm285, %v144, 0
    %v323 = vsel %vm285, %v146, 0
    %v326 = vsel %vm285, %v148, 0
    %v329 = vsel %vm285, %v150, 0
    %v332 = vsel %vm285, %v152, 0
    %334 = vmatprep.subr.bf16.mxu0 %v260
    %335 = vmatpush1.bf16.msra.mxu0 %v259
    %336 = vmatprep.subr.bf16.mxu0 %v258
    %337 = vmatpush1.bf16.msra.mxu0 %v257
    %338 = vmatprep.subr.bf16.mxu0 %v256
    %339 = vmatpush1.bf16.msra.mxu0 %v255
    %340 = vmatprep.subr.bf16.mxu0 %v254
    %341 = vmatpush1.bf16.msra.mxu0 %v253
    %342 = vmatprep.subr.bf16.mxu0 %v252
    %343 = vmatpush1.bf16.msra.mxu0 %v251
    %344 = vmatprep.subr.bf16.mxu0 %v250
    %345 = vmatpush1.bf16.msra.mxu0 %v249
    %346 = vmatprep.subr.bf16.mxu0 %v248
    %347 = vmatpush1.bf16.msra.mxu0 %v247
    %348 = vmatprep.subr.bf16.mxu0 %v246
    %349 = vmatpush1.bf16.msra.mxu0 %v245
    %350 = vmatprep.subr.bf16.mxu0 0
    %351 = vmatpush2.bf16.msra.mxu0 0
    %352 = vmatprep.subr.bf16.mxu0 0
    %353 = vmatpush2.bf16.msra.mxu0 0
    %354 = vmatprep.subr.bf16.mxu0 0
    %355 = vmatpush2.bf16.msra.mxu0 0
    %356 = vmatprep.subr.bf16.mxu0 0
    %357 = vmatpush2.bf16.msra.mxu0 0
    %358 = vmatprep.subr.bf16.mxu0 0
    %359 = vmatpush2.bf16.msra.mxu0 0
    %360 = vmatprep.subr.bf16.mxu0 0
    %361 = vmatpush2.bf16.msra.mxu0 0
    %362 = vmatprep.subr.bf16.mxu0 %v264
    %363 = vmatpush2.bf16.msra.mxu0 %v263
    %364 = vmatprep.subr.bf16.mxu0 %v262
    %365 = vmatpush2.bf16.msra.mxu0 %v261
    %366 = vmatprep.mubr.bf16.mxu0 %v287
    %367 = vmatmul.mubr.bf16.gmra.mxu0 %v121
    %v368 = vpop.f32.mrf.mxu0
    %v369 = vadd.f32 %v178, %v368
    %v370 = vpop.f32.mrf.mxu0
    %v371 = vadd.f32 %v182, %v370
    %v372 = vpop.f32.mrf.mxu0
    %v373 = vadd.f32 %v178, %v372
    %v374 = vpop.f32.mrf.mxu0
    %v375 = vadd.f32 %v182, %v374
    %376 = vmatprep.mubr.bf16.mxu0 %v290
    %377 = vmatmul.mubr.bf16.gmra.mxu0 %v123
    %v378 = vpop.f32.mrf.mxu0
    %v379 = vadd.f32 %v178, %v378
    %v380 = vpop.f32.mrf.mxu0
    %v381 = vadd.f32 %v182, %v380
    %v382 = vpop.f32.mrf.mxu0
    %v383 = vadd.f32 %v178, %v382
    %v384 = vpop.f32.mrf.mxu0
    %v385 = vadd.f32 %v182, %v384
    %386 = vmatprep.mubr.bf16.mxu0 %v293
    %387 = vmatmul.mubr.bf16.gmra.mxu0 %v125
    %v388 = vpop.f32.mrf.mxu0
    %v389 = vadd.f32 %v178, %v388
    %v390 = vpop.f32.mrf.mxu0
    %v391 = vadd.f32 %v182, %v390
    %v392 = vpop.f32.mrf.mxu0
    %v393 = vadd.f32 %v178, %v392
    %v394 = vpop.f32.mrf.mxu0
    %v395 = vadd.f32 %v182, %v394
    %396 = vmatprep.mubr.bf16.mxu0 %v296
    %397 = vmatmul.mubr.bf16.gmra.mxu0 %v127
    %v398 = vpop.f32.mrf.mxu0
    %v399 = vadd.f32 %v178, %v398
    %v400 = vpop.f32.mrf.mxu0
    %v401 = vadd.f32 %v182, %v400
    %v402 = vpop.f32.mrf.mxu0
    %v403 = vadd.f32 %v178, %v402
    %v404 = vpop.f32.mrf.mxu0
    %v405 = vadd.f32 %v182, %v404
    %406 = vmatprep.mubr.bf16.mxu0 %v299
    %407 = vmatmul.mubr.bf16.gmra.mxu0 %v129
    %v408 = vpop.f32.mrf.mxu0
    %v409 = vadd.f32 %v178, %v408
    %v410 = vpop.f32.mrf.mxu0
    %v411 = vadd.f32 %v182, %v410
    %v412 = vpop.f32.mrf.mxu0
    %v413 = vadd.f32 %v178, %v412
    %v414 = vpop.f32.mrf.mxu0
    %v415 = vadd.f32 %v182, %v414
    %416 = vmatprep.mubr.bf16.mxu0 %v302
    %417 = vmatmul.mubr.bf16.gmra.mxu0 %v131
    %v418 = vpop.f32.mrf.mxu0
    %v419 = vadd.f32 %v178, %v418
    %v420 = vpop.f32.mrf.mxu0
    %v421 = vadd.f32 %v182, %v420
    %v422 = vpop.f32.mrf.mxu0
    %v423 = vadd.f32 %v178, %v422
    %v424 = vpop.f32.mrf.mxu0
    %v425 = vadd.f32 %v182, %v424
    %426 = vmatprep.mubr.bf16.mxu0 %v305
    %427 = vmatmul.mubr.bf16.gmra.mxu0 %v133
    %v428 = vpop.f32.mrf.mxu0
    %v429 = vadd.f32 %v178, %v428
    %v430 = vpop.f32.mrf.mxu0
    %v431 = vadd.f32 %v182, %v430
    %v432 = vpop.f32.mrf.mxu0
    %v433 = vadd.f32 %v178, %v432
    %v434 = vpop.f32.mrf.mxu0
    %v435 = vadd.f32 %v182, %v434
    %436 = vmatprep.mubr.bf16.mxu0 %v308
    %437 = vmatmul.mubr.bf16.gmra.mxu0 %v135
    %v438 = vpop.f32.mrf.mxu0
    %v439 = vadd.f32 %v178, %v438
    %v440 = vpop.f32.mrf.mxu0
    %v441 = vadd.f32 %v182, %v440
    %v442 = vpop.f32.mrf.mxu0
    %v443 = vadd.f32 %v178, %v442
    %v444 = vpop.f32.mrf.mxu0
    %v445 = vadd.f32 %v182, %v444
    %446 = vmatprep.mubr.bf16.mxu0 %v311
    %447 = vmatmul.mubr.bf16.gmra.mxu0 %v137
    %v448 = vpop.f32.mrf.mxu0
    %v449 = vadd.f32 %v178, %v448
    %v450 = vpop.f32.mrf.mxu0
    %v451 = vadd.f32 %v182, %v450
    %v452 = vpop.f32.mrf.mxu0
    %v453 = vadd.f32 %v178, %v452
    %v454 = vpop.f32.mrf.mxu0
    %v455 = vadd.f32 %v182, %v454
    %456 = vmatprep.mubr.bf16.mxu0 %v314
    %457 = vmatmul.mubr.bf16.gmra.mxu0 %v139
    %v458 = vpop.f32.mrf.mxu0
    %v459 = vadd.f32 %v178, %v458
    %v460 = vpop.f32.mrf.mxu0
    %v461 = vadd.f32 %v182, %v460
    %v462 = vpop.f32.mrf.mxu0
    %v463 = vadd.f32 %v178, %v462
    %v464 = vpop.f32.mrf.mxu0
    %v465 = vadd.f32 %v182, %v464
    %466 = vmatprep.mubr.bf16.mxu0 %v317
    %467 = vmatmul.mubr.bf16.gmra.mxu0 %v141
    %v468 = vpop.f32.mrf.mxu0
    %v469 = vadd.f32 %v178, %v468
    %v470 = vpop.f32.mrf.mxu0
    %v471 = vadd.f32 %v182, %v470
    %v472 = vpop.f32.mrf.mxu0
    %v473 = vadd.f32 %v178, %v472
    %v474 = vpop.f32.mrf.mxu0
    %v475 = vadd.f32 %v182, %v474
    %476 = vmatprep.mubr.bf16.mxu0 %v320
    %477 = vmatmul.mubr.bf16.gmra.mxu0 %v143
    %v478 = vpop.f32.mrf.mxu0
    %v479 = vadd.f32 %v178, %v478
    %v480 = vpop.f32.mrf.mxu0
    %v481 = vadd.f32 %v182, %v480
    %v482 = vpop.f32.mrf.mxu0
    %v483 = vadd.f32 %v178, %v482
    %v484 = vpop.f32.mrf.mxu0
    %v485 = vadd.f32 %v182, %v484
    %486 = vmatprep.mubr.bf16.mxu0 %v323
    %487 = vmatmul.mubr.bf16.gmra.mxu0 %v145
    %v488 = vpop.f32.mrf.mxu0
    %v489 = vadd.f32 %v178, %v488
    %v490 = vpop.f32.mrf.mxu0
    %v491 = vadd.f32 %v182, %v490
    %v492 = vpop.f32.mrf.mxu0
    %v493 = vadd.f32 %v178, %v492
    %v494 = vpop.f32.mrf.mxu0
    %v495 = vadd.f32 %v182, %v494
    %496 = vmatprep.mubr.bf16.mxu0 %v326
    %497 = vmatmul.mubr.bf16.gmra.mxu0 %v147
    %v498 = vpop.f32.mrf.mxu0
    %v499 = vadd.f32 %v178, %v498
    %v500 = vpop.f32.mrf.mxu0
    %v501 = vadd.f32 %v182, %v500
    %v502 = vpop.f32.mrf.mxu0
    %v503 = vadd.f32 %v178, %v502
    %v504 = vpop.f32.mrf.mxu0
    %v505 = vadd.f32 %v182, %v504
    %506 = vmatprep.mubr.bf16.mxu0 %v329
    %507 = vmatmul.mubr.bf16.gmra.mxu0 %v149
    %v508 = vpop.f32.mrf.mxu0
    %v509 = vadd.f32 %v178, %v508
    %v510 = vpop.f32.mrf.mxu0
    %v511 = vadd.f32 %v182, %v510
    %v512 = vpop.f32.mrf.mxu0
    %v513 = vadd.f32 %v178, %v512
    %v514 = vpop.f32.mrf.mxu0
    %v515 = vadd.f32 %v182, %v514
    %516 = vmatprep.mubr.bf16.mxu0 %v332
    %517 = vmatmul.mubr.bf16.gmra.mxu0 %v151
    %v518 = vpop.f32.mrf.mxu0
    %v519 = vadd.f32 %v178, %v518
    %v520 = vpop.f32.mrf.mxu0
    %v521 = vadd.f32 %v182, %v520
    %v522 = vpop.f32.mrf.mxu0
    %v523 = vadd.f32 %v178, %v522
    %v524 = vpop.f32.mrf.mxu0
    %v525 = vadd.f32 %v182, %v524
    %526 = vdwg.mxu0
    %v527 = vmax.f32 %v369, 0.0
    %v528 = vmax.f32 %v371, 0.0
    %v529 = vmax.f32 %v373, 0.0
    %v530 = vmax.f32 %v375, 0.0
    %v531 = vmax.f32 %v379, 0.0
    %v532 = vmax.f32 %v381, 0.0
    %v533 = vmax.f32 %v383, 0.0
    %v534 = vmax.f32 %v385, 0.0
    %v535 = vmax.f32 %v389, 0.0
    %v536 = vmax.f32 %v391, 0.0
    %v537 = vmax.f32 %v393, 0.0
    %v538 = vmax.f32 %v395, 0.0
    %v539 = vmax.f32 %v399, 0.0
    %v540 = vmax.f32 %v401, 0.0
    %v541 = vmax.f32 %v403, 0.0
    %v542 = vmax.f32 %v405, 0.0
    %v543 = vmax.f32 %v409, 0.0
    %v544 = vmax.f32 %v411, 0.0
    %v545 = vmax.f32 %v413, 0.0
    %v546 = vmax.f32 %v415, 0.0
    %v547 = vmax.f32 %v419, 0.0
    %v548 = vmax.f32 %v421, 0.0
    %v549 = vmax.f32 %v423, 0.0
    %v550 = vmax.f32 %v425, 0.0
    %v551 = vmax.f32 %v429, 0.0
    %v552 = vmax.f32 %v431, 0.0
    %v553 = vmax.f32 %v433, 0.0
    %v554 = vmax.f32 %v435, 0.0
    %v555 = vmax.f32 %v439, 0.0
    %v556 = vmax.f32 %v441, 0.0
    %v557 = vmax.f32 %v443, 0.0
    %v558 = vmax.f32 %v445, 0.0
    %v559 = vmax.f32 %v449, 0.0
    %v560 = vmax.f32 %v451, 0.0
    %v561 = vmax.f32 %v453, 0.0
    %v562 = vmax.f32 %v455, 0.0
    %v563 = vmax.f32 %v459, 0.0
    %v564 = vmax.f32 %v461, 0.0
    %v565 = vmax.f32 %v463, 0.0
    %v566 = vmax.f32 %v465, 0.0
    %v567 = vmax.f32 %v469, 0.0
    %v568 = vmax.f32 %v471, 0.0
    %v569 = vmax.f32 %v473, 0.0
    %v570 = vmax.f32 %v475, 0.0
    %v571 = vmax.f32 %v479, 0.0
    %v572 = vmax.f32 %v481, 0.0
    %v573 = vmax.f32 %v483, 0.0
    %v574 = vmax.f32 %v485, 0.0
    %v575 = vmax.f32 %v489, 0.0
    %v576 = vmax.f32 %v491, 0.0
    %v577 = vmax.f32 %v493, 0.0
    %v578 = vmax.f32 %v495, 0.0
    %v579 = vmax.f32 %v499, 0.0
    %v580 = vmax.f32 %v501, 0.0
    %v581 = vmax.f32 %v503, 0.0
    %v582 = vmax.f32 %v505, 0.0
    %v583 = vmax.f32 %v509, 0.0
    %v584 = vmax.f32 %v511, 0.0
    %v585 = vmax.f32 %v513, 0.0
    %v586 = vmax.f32 %v515, 0.0
    %v587 = vmax.f32 %v519, 0.0
    %v588 = vmax.f32 %v521, 0.0
    %v589 = vmax.f32 %v523, 0.0
    %v590 = vmax.f32 %v525, 0.0
    %v591 = vpack.c.bf16 %v529, %v527
    %v592 = vpack.c.bf16 %v530, %v528
    %v593 = vpack.c.bf16 %v533, %v531
    %v594 = vpack.c.bf16 %v534, %v532
    %v595 = vpack.c.bf16 %v537, %v535
    %v596 = vpack.c.bf16 %v538, %v536
    %v597 = vpack.c.bf16 %v541, %v539
    %v598 = vpack.c.bf16 %v542, %v540
    %v599 = vpack.c.bf16 %v545, %v543
    %v600 = vpack.c.bf16 %v546, %v544
    %v601 = vpack.c.bf16 %v549, %v547
    %v602 = vpack.c.bf16 %v550, %v548
    %v603 = vpack.c.bf16 %v553, %v551
    %v604 = vpack.c.bf16 %v554, %v552
    %v605 = vpack.c.bf16 %v557, %v555
    %v606 = vpack.c.bf16 %v558, %v556
    %v607 = vpack.c.bf16 %v561, %v559
    %v608 = vpack.c.bf16 %v562, %v560
    %v609 = vpack.c.bf16 %v565, %v563
    %v610 = vpack.c.bf16 %v566, %v564
    %v611 = vpack.c.bf16 %v569, %v567
    %v612 = vpack.c.bf16 %v570, %v568
    %v613 = vpack.c.bf16 %v573, %v571
    %v614 = vpack.c.bf16 %v574, %v572
    %v615 = vpack.c.bf16 %v577, %v575
    %v616 = vpack.c.bf16 %v578, %v576
    %v617 = vpack.c.bf16 %v581, %v579
    %v618 = vpack.c.bf16 %v582, %v580
    %v619 = vpack.c.bf16 %v585, %v583
    %v620 = vpack.c.bf16 %v586, %v584
    %v621 = vpack.c.bf16 %v589, %v587
    %v622 = vpack.c.bf16 %v590, %v588
    %v623 = vld [vmem:[%s3] sm:$0xff]
    %v624 = vld [vmem:[%s3 + $0x8] sm:$0xff]
    %v625 = vld [vmem:[%s3 + $0x10] sm:$0xff]
    %v626 = vld [vmem:[%s3 + $0x18] sm:$0xff]
    %v627 = vld [vmem:[%s3 + $0x20] sm:$0xff]
    %v628 = vld [vmem:[%s3 + $0x28] sm:$0xff]
    %v629 = vld [vmem:[%s3 + $0x30] sm:$0xff]
    %v630 = vld [vmem:[%s3 + $0x38] sm:$0xff]
    %v631 = vld [vmem:[%s3 + $0x40] sm:$0xff]
    %v632 = vld [vmem:[%s3 + $0x48] sm:$0xff]
    %v633 = vld [vmem:[%s3 + $0x50] sm:$0xff]
    %v634 = vld [vmem:[%s3 + $0x58] sm:$0xff]
    %v635 = vld [vmem:[%s3 + $0x60] sm:$0xff]
    %v636 = vld [vmem:[%s3 + $0x68] sm:$0xff]
    %v637 = vld [vmem:[%s3 + $0x70] sm:$0xff]
    %v638 = vld [vmem:[%s3 + $0x78] sm:$0xff]
    %v639 = vld [vmem:[%s3 + $0x80] sm:$0xff]
    %v640 = vld [vmem:[%s3 + $0x88] sm:$0xff]
    %v641 = vld [vmem:[%s3 + $0x90] sm:$0xff]
    %v642 = vld [vmem:[%s3 + $0x98] sm:$0xff]
    %v643 = vld [vmem:[%s3 + $0xa0] sm:$0xff]
    %v644 = vld [vmem:[%s3 + $0xa8] sm:$0xff]
    %v645 = vld [vmem:[%s3 + $0xb0] sm:$0xff]
    %v646 = vld [vmem:[%s3 + $0xb8] sm:$0xff]
    %v647 = vld [vmem:[%s3 + $0xc0] sm:$0xff]
    %v648 = vld [vmem:[%s3 + $0xc8] sm:$0xff]
    %v649 = vld [vmem:[%s3 + $0xd0] sm:$0xff]
    %v650 = vld [vmem:[%s3 + $0xd8] sm:$0xff]
    %v651 = vld [vmem:[%s3 + $0xe0] sm:$0xff]
    %v652 = vld [vmem:[%s3 + $0xe8] sm:$0xff]
    %v653 = vld [vmem:[%s3 + $0xf0] sm:$0xff]
    %v654 = vld [vmem:[%s3 + $0xf8] sm:$0xff]
    %v655 = vld [vmem:[%s4] sm:$0x3]
    %v657 = vlaneseq
    %v658 = vshrl.u32 %v657, 7
    %v659 = vsub.s32 0, %v658
    %v660 = vrot.slane %v655, %v659
    %v661 = vlaneseq
    %v662 = vshrl.u32 %v661, 7
    %v663 = vsub.s32 1, %v662
    %v664 = vrot.slane %v655, %v663
    %v699 = vunpack.c.l.b16 %v623
    %v700 = vunpack.c.h.b16 %v623
    %v701 = vunpack.c.l.b16 %v624
    %v702 = vunpack.c.h.b16 %v624
    %v703 = vunpack.c.l.b16 %v625
    %v704 = vunpack.c.h.b16 %v625
    %v705 = vunpack.c.l.b16 %v626
    %v706 = vunpack.c.h.b16 %v626
    %v707 = vunpack.c.l.b16 %v627
    %v708 = vunpack.c.h.b16 %v627
    %v709 = vunpack.c.l.b16 %v628
    %v710 = vunpack.c.h.b16 %v628
    %v711 = vunpack.c.l.b16 %v629
    %v712 = vunpack.c.h.b16 %v629
    %v713 = vunpack.c.l.b16 %v630
    %v714 = vunpack.c.h.b16 %v630
    %v715 = vunpack.c.l.b16 %v631
    %v716 = vunpack.c.h.b16 %v631
    %v717 = vunpack.c.l.b16 %v632
    %v718 = vunpack.c.h.b16 %v632
    %v719 = vunpack.c.l.b16 %v633
    %v720 = vunpack.c.h.b16 %v633
    %v721 = vunpack.c.l.b16 %v634
    %v722 = vunpack.c.h.b16 %v634
    %v723 = vunpack.c.l.b16 %v635
    %v724 = vunpack.c.h.b16 %v635
    %v725 = vunpack.c.l.b16 %v636
    %v726 = vunpack.c.h.b16 %v636
    %v727 = vunpack.c.l.b16 %v637
    %v728 = vunpack.c.h.b16 %v637
    %v729 = vunpack.c.l.b16 %v638
    %v730 = vunpack.c.h.b16 %v638
    %v731 = vunpack.c.l.b16 %v639
    %v732 = vunpack.c.h.b16 %v639
    %v733 = vunpack.c.l.b16 %v640
    %v734 = vunpack.c.h.b16 %v640
    %v735 = vunpack.c.l.b16 %v641
    %v736 = vunpack.c.h.b16 %v641
    %v737 = vunpack.c.l.b16 %v642
    %v738 = vunpack.c.h.b16 %v642
    %v739 = vunpack.c.l.b16 %v643
    %v740 = vunpack.c.h.b16 %v643
    %v741 = vunpack.c.l.b16 %v644
    %v742 = vunpack.c.h.b16 %v644
    %v743 = vunpack.c.l.b16 %v645
    %v744 = vunpack.c.h.b16 %v645
    %v745 = vunpack.c.l.b16 %v646
    %v746 = vunpack.c.h.b16 %v646
    %v747 = vunpack.c.l.b16 %v647
    %v748 = vunpack.c.h.b16 %v647
    %v749 = vunpack.c.l.b16 %v648
    %v750 = vunpack.c.h.b16 %v648
    %v751 = vunpack.c.l.b16 %v649
    %v752 = vunpack.c.h.b16 %v649
    %v753 = vunpack.c.l.b16 %v650
    %v754 = vunpack.c.h.b16 %v650
    %v755 = vunpack.c.l.b16 %v651
    %v756 = vunpack.c.h.b16 %v651
    %v757 = vunpack.c.l.b16 %v652
    %v758 = vunpack.c.h.b16 %v652
    %v759 = vunpack.c.l.b16 %v653
    %v760 = vunpack.c.h.b16 %v653
    %v761 = vunpack.c.l.b16 %v654
    %v762 = vunpack.c.h.b16 %v654
    %v763 = vpack.c.b16 %v701, %v699
    %v764 = vpack.c.b16 %v702, %v700
    %v765 = vpack.c.b16 %v705, %v703
    %v766 = vpack.c.b16 %v706, %v704
    %v767 = vpack.c.b16 %v709, %v707
    %v768 = vpack.c.b16 %v710, %v708
    %v769 = vpack.c.b16 %v713, %v711
    %v770 = vpack.c.b16 %v714, %v712
    %v771 = vpack.c.b16 %v717, %v715
    %v772 = vpack.c.b16 %v718, %v716
    %v773 = vpack.c.b16 %v721, %v719
    %v774 = vpack.c.b16 %v722, %v720
    %v775 = vpack.c.b16 %v725, %v723
    %v776 = vpack.c.b16 %v726, %v724
    %v777 = vpack.c.b16 %v729, %v727
    %v778 = vpack.c.b16 %v730, %v728
    %v779 = vpack.c.b16 %v733, %v731
    %v780 = vpack.c.b16 %v734, %v732
    %v781 = vpack.c.b16 %v737, %v735
    %v782 = vpack.c.b16 %v738, %v736
    %v783 = vpack.c.b16 %v741, %v739
    %v784 = vpack.c.b16 %v742, %v740
    %v785 = vpack.c.b16 %v745, %v743
    %v786 = vpack.c.b16 %v746, %v744
    %v787 = vpack.c.b16 %v749, %v747
    %v788 = vpack.c.b16 %v750, %v748
    %v789 = vpack.c.b16 %v753, %v751
    %v790 = vpack.c.b16 %v754, %v752
    %v791 = vpack.c.b16 %v757, %v755
    %v792 = vpack.c.b16 %v758, %v756
    %v793 = vpack.c.b16 %v761, %v759
    %v794 = vpack.c.b16 %v762, %v760
    %827 = vmatprep.subr.bf16.mxu0 %v778
    %828 = vmatpush1.bf16.msra.mxu0 %v777
    %829 = vmatprep.subr.bf16.mxu0 %v776
    %830 = vmatpush1.bf16.msra.mxu0 %v775
    %831 = vmatprep.subr.bf16.mxu0 %v774
    %832 = vmatpush1.bf16.msra.mxu0 %v773
    %833 = vmatprep.subr.bf16.mxu0 %v772
    %834 = vmatpush1.bf16.msra.mxu0 %v771
    %835 = vmatprep.subr.bf16.mxu0 %v770
    %836 = vmatpush1.bf16.msra.mxu0 %v769
    %837 = vmatprep.subr.bf16.mxu0 %v768
    %838 = vmatpush1.bf16.msra.mxu0 %v767
    %839 = vmatprep.subr.bf16.mxu0 %v766
    %840 = vmatpush1.bf16.msra.mxu0 %v765
    %841 = vmatprep.subr.bf16.mxu0 %v764
    %842 = vmatpush1.bf16.msra.mxu0 %v763
    %843 = vmatprep.subr.bf16.mxu0 %v794
    %844 = vmatpush2.bf16.msra.mxu0 %v793
    %845 = vmatprep.subr.bf16.mxu0 %v792
    %846 = vmatpush2.bf16.msra.mxu0 %v791
    %847 = vmatprep.subr.bf16.mxu0 %v790
    %848 = vmatpush2.bf16.msra.mxu0 %v789
    %849 = vmatprep.subr.bf16.mxu0 %v788
    %850 = vmatpush2.bf16.msra.mxu0 %v787
    %851 = vmatprep.subr.bf16.mxu0 %v786
    %852 = vmatpush2.bf16.msra.mxu0 %v785
    %853 = vmatprep.subr.bf16.mxu0 %v784
    %854 = vmatpush2.bf16.msra.mxu0 %v783
    %855 = vmatprep.subr.bf16.mxu0 %v782
    %856 = vmatpush2.bf16.msra.mxu0 %v781
    %857 = vmatprep.subr.bf16.mxu0 %v780
    %858 = vmatpush2.bf16.msra.mxu0 %v779
    %859 = vmatprep.mubr.bf16.mxu0 %v592
    %860 = vmatmul.mubr.bf16.gmra.mxu0 %v591
    %v861 = vpop.f32.mrf.mxu0
    %v862 = vadd.f32 %v660, %v861
    %v863 = vpop.f32.mrf.mxu0
    %v864 = vadd.f32 %v664, %v863
    %v865 = vpop.f32.mrf.mxu0
    %v866 = vadd.f32 %v660, %v865
    %v867 = vpop.f32.mrf.mxu0
    %v868 = vadd.f32 %v664, %v867
    %869 = vmatprep.mubr.bf16.mxu0 %v594
    %870 = vmatmul.mubr.bf16.gmra.mxu0 %v593
    %v871 = vpop.f32.mrf.mxu0
    %v872 = vadd.f32 %v660, %v871
    %v873 = vpop.f32.mrf.mxu0
    %v874 = vadd.f32 %v664, %v873
    %v875 = vpop.f32.mrf.mxu0
    %v876 = vadd.f32 %v660, %v875
    %v877 = vpop.f32.mrf.mxu0
    %v878 = vadd.f32 %v664, %v877
    %879 = vmatprep.mubr.bf16.mxu0 %v596
    %880 = vmatmul.mubr.bf16.gmra.mxu0 %v595
    %v881 = vpop.f32.mrf.mxu0
    %v882 = vadd.f32 %v660, %v881
    %v883 = vpop.f32.mrf.mxu0
    %v884 = vadd.f32 %v664, %v883
    %v885 = vpop.f32.mrf.mxu0
    %v886 = vadd.f32 %v660, %v885
    %v887 = vpop.f32.mrf.mxu0
    %v888 = vadd.f32 %v664, %v887
    %889 = vmatprep.mubr.bf16.mxu0 %v598
    %890 = vmatmul.mubr.bf16.gmra.mxu0 %v597
    %v891 = vpop.f32.mrf.mxu0
    %v892 = vadd.f32 %v660, %v891
    %v893 = vpop.f32.mrf.mxu0
    %v894 = vadd.f32 %v664, %v893
    %v895 = vpop.f32.mrf.mxu0
    %v896 = vadd.f32 %v660, %v895
    %v897 = vpop.f32.mrf.mxu0
    %v898 = vadd.f32 %v664, %v897
    %899 = vmatprep.mubr.bf16.mxu0 %v600
    %900 = vmatmul.mubr.bf16.gmra.mxu0 %v599
    %v901 = vpop.f32.mrf.mxu0
    %v902 = vadd.f32 %v660, %v901
    %v903 = vpop.f32.mrf.mxu0
    %v904 = vadd.f32 %v664, %v903
    %v905 = vpop.f32.mrf.mxu0
    %v906 = vadd.f32 %v660, %v905
    %v907 = vpop.f32.mrf.mxu0
    %v908 = vadd.f32 %v664, %v907
    %909 = vmatprep.mubr.bf16.mxu0 %v602
    %910 = vmatmul.mubr.bf16.gmra.mxu0 %v601
    %v911 = vpop.f32.mrf.mxu0
    %v912 = vadd.f32 %v660, %v911
    %v913 = vpop.f32.mrf.mxu0
    %v914 = vadd.f32 %v664, %v913
    %v915 = vpop.f32.mrf.mxu0
    %v916 = vadd.f32 %v660, %v915
    %v917 = vpop.f32.mrf.mxu0
    %v918 = vadd.f32 %v664, %v917
    %919 = vmatprep.mubr.bf16.mxu0 %v604
    %920 = vmatmul.mubr.bf16.gmra.mxu0 %v603
    %v921 = vpop.f32.mrf.mxu0
    %v922 = vadd.f32 %v660, %v921
    %v923 = vpop.f32.mrf.mxu0
    %v924 = vadd.f32 %v664, %v923
    %v925 = vpop.f32.mrf.mxu0
    %v926 = vadd.f32 %v660, %v925
    %v927 = vpop.f32.mrf.mxu0
    %v928 = vadd.f32 %v664, %v927
    %929 = vmatprep.mubr.bf16.mxu0 %v606
    %930 = vmatmul.mubr.bf16.gmra.mxu0 %v605
    %v931 = vpop.f32.mrf.mxu0
    %v932 = vadd.f32 %v660, %v931
    %v933 = vpop.f32.mrf.mxu0
    %v934 = vadd.f32 %v664, %v933
    %v935 = vpop.f32.mrf.mxu0
    %v936 = vadd.f32 %v660, %v935
    %v937 = vpop.f32.mrf.mxu0
    %v938 = vadd.f32 %v664, %v937
    %939 = vmatprep.mubr.bf16.mxu0 %v608
    %940 = vmatmul.mubr.bf16.gmra.mxu0 %v607
    %v941 = vpop.f32.mrf.mxu0
    %v942 = vadd.f32 %v660, %v941
    %v943 = vpop.f32.mrf.mxu0
    %v944 = vadd.f32 %v664, %v943
    %v945 = vpop.f32.mrf.mxu0
    %v946 = vadd.f32 %v660, %v945
    %v947 = vpop.f32.mrf.mxu0
    %v948 = vadd.f32 %v664, %v947
    %949 = vmatprep.mubr.bf16.mxu0 %v610
    %950 = vmatmul.mubr.bf16.gmra.mxu0 %v609
    %v951 = vpop.f32.mrf.mxu0
    %v952 = vadd.f32 %v660, %v951
    %v953 = vpop.f32.mrf.mxu0
    %v954 = vadd.f32 %v664, %v953
    %v955 = vpop.f32.mrf.mxu0
    %v956 = vadd.f32 %v660, %v955
    %v957 = vpop.f32.mrf.mxu0
    %v958 = vadd.f32 %v664, %v957
    %959 = vmatprep.mubr.bf16.mxu0 %v612
    %960 = vmatmul.mubr.bf16.gmra.mxu0 %v611
    %v961 = vpop.f32.mrf.mxu0
    %v962 = vadd.f32 %v660, %v961
    %v963 = vpop.f32.mrf.mxu0
    %v964 = vadd.f32 %v664, %v963
    %v965 = vpop.f32.mrf.mxu0
    %v966 = vadd.f32 %v660, %v965
    %v967 = vpop.f32.mrf.mxu0
    %v968 = vadd.f32 %v664, %v967
    %969 = vmatprep.mubr.bf16.mxu0 %v614
    %970 = vmatmul.mubr.bf16.gmra.mxu0 %v613
    %v971 = vpop.f32.mrf.mxu0
    %v972 = vadd.f32 %v660, %v971
    %v973 = vpop.f32.mrf.mxu0
    %v974 = vadd.f32 %v664, %v973
    %v975 = vpop.f32.mrf.mxu0
    %v976 = vadd.f32 %v660, %v975
    %v977 = vpop.f32.mrf.mxu0
    %v978 = vadd.f32 %v664, %v977
    %979 = vmatprep.mubr.bf16.mxu0 %v616
    %980 = vmatmul.mubr.bf16.gmra.mxu0 %v615
    %v981 = vpop.f32.mrf.mxu0
    %v982 = vadd.f32 %v660, %v981
    %v983 = vpop.f32.mrf.mxu0
    %v984 = vadd.f32 %v664, %v983
    %v985 = vpop.f32.mrf.mxu0
    %v986 = vadd.f32 %v660, %v985
    %v987 = vpop.f32.mrf.mxu0
    %v988 = vadd.f32 %v664, %v987
    %989 = vmatprep.mubr.bf16.mxu0 %v618
    %990 = vmatmul.mubr.bf16.gmra.mxu0 %v617
    %v991 = vpop.f32.mrf.mxu0
    %v992 = vadd.f32 %v660, %v991
    %v993 = vpop.f32.mrf.mxu0
    %v994 = vadd.f32 %v664, %v993
    %v995 = vpop.f32.mrf.mxu0
    %v996 = vadd.f32 %v660, %v995
    %v997 = vpop.f32.mrf.mxu0
    %v998 = vadd.f32 %v664, %v997
    %999 = vmatprep.mubr.bf16.mxu0 %v620
    %1000 = vmatmul.mubr.bf16.gmra.mxu0 %v619
    %v1001 = vpop.f32.mrf.mxu0
    %v1002 = vadd.f32 %v660, %v1001
    %v1003 = vpop.f32.mrf.mxu0
    %v1004 = vadd.f32 %v664, %v1003
    %v1005 = vpop.f32.mrf.mxu0
    %v1006 = vadd.f32 %v660, %v1005
    %v1007 = vpop.f32.mrf.mxu0
    %v1008 = vadd.f32 %v664, %v1007
    %1009 = vmatprep.mubr.bf16.mxu0 %v622
    %1010 = vmatmul.mubr.bf16.gmra.mxu0 %v621
    %v1011 = vpop.f32.mrf.mxu0
    %v1012 = vadd.f32 %v660, %v1011
    %v1013 = vpop.f32.mrf.mxu0
    %v1014 = vadd.f32 %v664, %v1013
    %v1015 = vpop.f32.mrf.mxu0
    %v1016 = vadd.f32 %v660, %v1015
    %v1017 = vpop.f32.mrf.mxu0
    %v1018 = vadd.f32 %v664, %v1017
    %1019 = vdwg.mxu0
    %v1020 = vmax.f32 %v862, 0.0
    %v1021 = vmax.f32 %v864, 0.0
    %v1022 = vmax.f32 %v866, 0.0
    %v1023 = vmax.f32 %v868, 0.0
    %v1024 = vmax.f32 %v872, 0.0
    %v1025 = vmax.f32 %v874, 0.0
    %v1026 = vmax.f32 %v876, 0.0
    %v1027 = vmax.f32 %v878, 0.0
    %v1028 = vmax.f32 %v882, 0.0
    %v1029 = vmax.f32 %v884, 0.0
    %v1030 = vmax.f32 %v886, 0.0
    %v1031 = vmax.f32 %v888, 0.0
    %v1032 = vmax.f32 %v892, 0.0
    %v1033 = vmax.f32 %v894, 0.0
    %v1034 = vmax.f32 %v896, 0.0
    %v1035 = vmax.f32 %v898, 0.0
    %v1036 = vmax.f32 %v902, 0.0
    %v1037 = vmax.f32 %v904, 0.0
    %v1038 = vmax.f32 %v906, 0.0
    %v1039 = vmax.f32 %v908, 0.0
    %v1040 = vmax.f32 %v912, 0.0
    %v1041 = vmax.f32 %v914, 0.0
    %v1042 = vmax.f32 %v916, 0.0
    %v1043 = vmax.f32 %v918, 0.0
    %v1044 = vmax.f32 %v922, 0.0
    %v1045 = vmax.f32 %v924, 0.0
    %v1046 = vmax.f32 %v926, 0.0
    %v1047 = vmax.f32 %v928, 0.0
    %v1048 = vmax.f32 %v932, 0.0
    %v1049 = vmax.f32 %v934, 0.0
    %v1050 = vmax.f32 %v936, 0.0
    %v1051 = vmax.f32 %v938, 0.0
    %v1052 = vmax.f32 %v942, 0.0
    %v1053 = vmax.f32 %v944, 0.0
    %v1054 = vmax.f32 %v946, 0.0
    %v1055 = vmax.f32 %v948, 0.0
    %v1056 = vmax.f32 %v952, 0.0
    %v1057 = vmax.f32 %v954, 0.0
    %v1058 = vmax.f32 %v956, 0.0
    %v1059 = vmax.f32 %v958, 0.0
    %v1060 = vmax.f32 %v962, 0.0
    %v1061 = vmax.f32 %v964, 0.0
    %v1062 = vmax.f32 %v966, 0.0
    %v1063 = vmax.f32 %v968, 0.0
    %v1064 = vmax.f32 %v972, 0.0
    %v1065 = vmax.f32 %v974, 0.0
    %v1066 = vmax.f32 %v976, 0.0
    %v1067 = vmax.f32 %v978, 0.0
    %v1068 = vmax.f32 %v982, 0.0
    %v1069 = vmax.f32 %v984, 0.0
    %v1070 = vmax.f32 %v986, 0.0
    %v1071 = vmax.f32 %v988, 0.0
    %v1072 = vmax.f32 %v992, 0.0
    %v1073 = vmax.f32 %v994, 0.0
    %v1074 = vmax.f32 %v996, 0.0
    %v1075 = vmax.f32 %v998, 0.0
    %v1076 = vmax.f32 %v1002, 0.0
    %v1077 = vmax.f32 %v1004, 0.0
    %v1078 = vmax.f32 %v1006, 0.0
    %v1079 = vmax.f32 %v1008, 0.0
    %v1080 = vmax.f32 %v1012, 0.0
    %v1081 = vmax.f32 %v1014, 0.0
    %v1082 = vmax.f32 %v1016, 0.0
    %v1083 = vmax.f32 %v1018, 0.0
    %v1084 = vpack.c.bf16 %v1022, %v1020
    %v1085 = vpack.c.bf16 %v1023, %v1021
    %v1086 = vpack.c.bf16 %v1026, %v1024
    %v1087 = vpack.c.bf16 %v1027, %v1025
    %v1088 = vpack.c.bf16 %v1030, %v1028
    %v1089 = vpack.c.bf16 %v1031, %v1029
    %v1090 = vpack.c.bf16 %v1034, %v1032
    %v1091 = vpack.c.bf16 %v1035, %v1033
    %v1092 = vpack.c.bf16 %v1038, %v1036
    %v1093 = vpack.c.bf16 %v1039, %v1037
    %v1094 = vpack.c.bf16 %v1042, %v1040
    %v1095 = vpack.c.bf16 %v1043, %v1041
    %v1096 = vpack.c.bf16 %v1046, %v1044
    %v1097 = vpack.c.bf16 %v1047, %v1045
    %v1098 = vpack.c.bf16 %v1050, %v1048
    %v1099 = vpack.c.bf16 %v1051, %v1049
    %v1100 = vpack.c.bf16 %v1054, %v1052
    %v1101 = vpack.c.bf16 %v1055, %v1053
    %v1102 = vpack.c.bf16 %v1058, %v1056
    %v1103 = vpack.c.bf16 %v1059, %v1057
    %v1104 = vpack.c.bf16 %v1062, %v1060
    %v1105 = vpack.c.bf16 %v1063, %v1061
    %v1106 = vpack.c.bf16 %v1066, %v1064
    %v1107 = vpack.c.bf16 %v1067, %v1065
    %v1108 = vpack.c.bf16 %v1070, %v1068
    %v1109 = vpack.c.bf16 %v1071, %v1069
    %v1110 = vpack.c.bf16 %v1074, %v1072
    %v1111 = vpack.c.bf16 %v1075, %v1073
    %v1112 = vpack.c.bf16 %v1078, %v1076
    %v1113 = vpack.c.bf16 %v1079, %v1077
    %v1114 = vpack.c.bf16 %v1082, %v1080
    %v1115 = vpack.c.bf16 %v1083, %v1081
    %v1116 = vld [vmem:[%s5] sm:$0xf]
    %v1117 = vld [vmem:[%s5 + $0x4] sm:$0xf]
    %v1118 = vld [vmem:[%s5 + $0x8] sm:$0xf]
    %v1119 = vld [vmem:[%s5 + $0xc] sm:$0xf]
    %v1120 = vld [vmem:[%s5 + $0x10] sm:$0xf]
    %v1121 = vld [vmem:[%s5 + $0x14] sm:$0xf]
    %v1122 = vld [vmem:[%s5 + $0x18] sm:$0xf]
    %v1123 = vld [vmem:[%s5 + $0x1c] sm:$0xf]
    %v1124 = vld [vmem:[%s5 + $0x20] sm:$0xf]
    %v1125 = vld [vmem:[%s5 + $0x24] sm:$0xf]
    %v1126 = vld [vmem:[%s5 + $0x28] sm:$0xf]
    %v1127 = vld [vmem:[%s5 + $0x2c] sm:$0xf]
    %v1128 = vld [vmem:[%s5 + $0x30] sm:$0xf]
    %v1129 = vld [vmem:[%s5 + $0x34] sm:$0xf]
    %v1130 = vld [vmem:[%s5 + $0x38] sm:$0xf]
    %v1131 = vld [vmem:[%s5 + $0x3c] sm:$0xf]
    %v1132 = vld [vmem:[%s5 + $0x40] sm:$0xf]
    %v1133 = vld [vmem:[%s5 + $0x44] sm:$0xf]
    %v1134 = vld [vmem:[%s5 + $0x48] sm:$0xf]
    %v1135 = vld [vmem:[%s5 + $0x4c] sm:$0xf]
    %v1136 = vld [vmem:[%s5 + $0x50] sm:$0xf]
    %v1137 = vld [vmem:[%s5 + $0x54] sm:$0xf]
    %v1138 = vld [vmem:[%s5 + $0x58] sm:$0xf]
    %v1139 = vld [vmem:[%s5 + $0x5c] sm:$0xf]
    %v1140 = vld [vmem:[%s5 + $0x60] sm:$0xf]
    %v1141 = vld [vmem:[%s5 + $0x64] sm:$0xf]
    %v1142 = vld [vmem:[%s5 + $0x68] sm:$0xf]
    %v1143 = vld [vmem:[%s5 + $0x6c] sm:$0xf]
    %v1144 = vld [vmem:[%s5 + $0x70] sm:$0xf]
    %v1145 = vld [vmem:[%s5 + $0x74] sm:$0xf]
    %v1146 = vld [vmem:[%s5 + $0x78] sm:$0xf]
    %v1147 = vld [vmem:[%s5 + $0x7c] sm:$0xf]
    %v1148 = vld [vmem:[%s6] sm:$0x1]
    %v1150 = vlaneseq
    %v1151 = vshrl.u32 %v1150, 7
    %v1152 = vsub.s32 0, %v1151
    %v1153 = vrot.slane %v1148, %v1152
    %v1187 = vunpack.c.l.b16 %v1116
    %v1188 = vunpack.c.l.b16 %v1117
    %v1189 = vunpack.c.l.b16 %v1118
    %v1190 = vunpack.c.l.b16 %v1119
    %v1191 = vunpack.c.l.b16 %v1120
    %v1192 = vunpack.c.l.b16 %v1121
    %v1193 = vunpack.c.l.b16 %v1122
    %v1194 = vunpack.c.l.b16 %v1123
    %v1195 = vunpack.c.l.b16 %v1124
    %v1196 = vunpack.c.l.b16 %v1125
    %v1197 = vunpack.c.l.b16 %v1126
    %v1198 = vunpack.c.l.b16 %v1127
    %v1199 = vunpack.c.l.b16 %v1128
    %v1200 = vunpack.c.l.b16 %v1129
    %v1201 = vunpack.c.l.b16 %v1130
    %v1202 = vunpack.c.l.b16 %v1131
    %v1203 = vunpack.c.l.b16 %v1132
    %v1204 = vunpack.c.l.b16 %v1133
    %v1205 = vunpack.c.l.b16 %v1134
    %v1206 = vunpack.c.l.b16 %v1135
    %v1207 = vunpack.c.l.b16 %v1136
    %v1208 = vunpack.c.l.b16 %v1137
    %v1209 = vunpack.c.l.b16 %v1138
    %v1210 = vunpack.c.l.b16 %v1139
    %v1211 = vunpack.c.l.b16 %v1140
    %v1212 = vunpack.c.l.b16 %v1141
    %v1213 = vunpack.c.l.b16 %v1142
    %v1214 = vunpack.c.l.b16 %v1143
    %v1215 = vunpack.c.l.b16 %v1144
    %v1216 = vunpack.c.l.b16 %v1145
    %v1217 = vunpack.c.l.b16 %v1146
    %v1218 = vunpack.c.l.b16 %v1147
    %v1219 = vpack.c.b16 %v1188, %v1187
    %v1220 = vpack.c.b16 %v1190, %v1189
    %v1221 = vpack.c.b16 %v1192, %v1191
    %v1222 = vpack.c.b16 %v1194, %v1193
    %v1223 = vpack.c.b16 %v1196, %v1195
    %v1224 = vpack.c.b16 %v1198, %v1197
    %v1225 = vpack.c.b16 %v1200, %v1199
    %v1226 = vpack.c.b16 %v1202, %v1201
    %v1227 = vpack.c.b16 %v1204, %v1203
    %v1228 = vpack.c.b16 %v1206, %v1205
    %v1229 = vpack.c.b16 %v1208, %v1207
    %v1230 = vpack.c.b16 %v1210, %v1209
    %v1231 = vpack.c.b16 %v1212, %v1211
    %v1232 = vpack.c.b16 %v1214, %v1213
    %v1233 = vpack.c.b16 %v1216, %v1215
    %v1234 = vpack.c.b16 %v1218, %v1217
    %1251 = vmatprep.subr.bf16.mxu0 0
    %1252 = vmatpush1.bf16.msra.mxu0 %v1226
    %1253 = vmatprep.subr.bf16.mxu0 0
    %1254 = vmatpush1.bf16.msra.mxu0 %v1225
    %1255 = vmatprep.subr.bf16.mxu0 0
    %1256 = vmatpush1.bf16.msra.mxu0 %v1224
    %1257 = vmatprep.subr.bf16.mxu0 0
    %1258 = vmatpush1.bf16.msra.mxu0 %v1223
    %1259 = vmatprep.subr.bf16.mxu0 0
    %1260 = vmatpush1.bf16.msra.mxu0 %v1222
    %1261 = vmatprep.subr.bf16.mxu0 0
    %1262 = vmatpush1.bf16.msra.mxu0 %v1221
    %1263 = vmatprep.subr.bf16.mxu0 0
    %1264 = vmatpush1.bf16.msra.mxu0 %v1220
    %1265 = vmatprep.subr.bf16.mxu0 0
    %1266 = vmatpush1.bf16.msra.mxu0 %v1219
    %1267 = vmatprep.subr.bf16.mxu0 0
    %1268 = vmatpush2.bf16.msra.mxu0 %v1234
    %1269 = vmatprep.subr.bf16.mxu0 0
    %1270 = vmatpush2.bf16.msra.mxu0 %v1233
    %1271 = vmatprep.subr.bf16.mxu0 0
    %1272 = vmatpush2.bf16.msra.mxu0 %v1232
    %1273 = vmatprep.subr.bf16.mxu0 0
    %1274 = vmatpush2.bf16.msra.mxu0 %v1231
    %1275 = vmatprep.subr.bf16.mxu0 0
    %1276 = vmatpush2.bf16.msra.mxu0 %v1230
    %1277 = vmatprep.subr.bf16.mxu0 0
    %1278 = vmatpush2.bf16.msra.mxu0 %v1229
    %1279 = vmatprep.subr.bf16.mxu0 0
    %1280 = vmatpush2.bf16.msra.mxu0 %v1228
    %1281 = vmatprep.subr.bf16.mxu0 0
    %1282 = vmatpush2.bf16.msra.mxu0 %v1227
    %1283 = vmatprep.mubr.bf16.mxu0 %v1085
    %1284 = vmatmul.mubr.bf16.gmra.mxu0 %v1084
    %v1285 = vpop.f32.mrf.mxu0
    %v1286 = vadd.f32 %v1153, %v1285
    %v1287 = vpop.f32.mrf.mxu0
    %v1288 = vpop.f32.mrf.mxu0
    %v1289 = vadd.f32 %v1153, %v1288
    %v1290 = vpop.f32.mrf.mxu0
    %1291 = vmatprep.mubr.bf16.mxu0 %v1087
    %1292 = vmatmul.mubr.bf16.gmra.mxu0 %v1086
    %v1293 = vpop.f32.mrf.mxu0
    %v1294 = vadd.f32 %v1153, %v1293
    %v1295 = vpop.f32.mrf.mxu0
    %v1296 = vpop.f32.mrf.mxu0
    %v1297 = vadd.f32 %v1153, %v1296
    %v1298 = vpop.f32.mrf.mxu0
    %1299 = vmatprep.mubr.bf16.mxu0 %v1089
    %1300 = vmatmul.mubr.bf16.gmra.mxu0 %v1088
    %v1301 = vpop.f32.mrf.mxu0
    %v1302 = vadd.f32 %v1153, %v1301
    %v1303 = vpop.f32.mrf.mxu0
    %v1304 = vpop.f32.mrf.mxu0
    %v1305 = vadd.f32 %v1153, %v1304
    %v1306 = vpop.f32.mrf.mxu0
    %1307 = vmatprep.mubr.bf16.mxu0 %v1091
    %1308 = vmatmul.mubr.bf16.gmra.mxu0 %v1090
    %v1309 = vpop.f32.mrf.mxu0
    %v1310 = vadd.f32 %v1153, %v1309
    %v1311 = vpop.f32.mrf.mxu0
    %v1312 = vpop.f32.mrf.mxu0
    %v1313 = vadd.f32 %v1153, %v1312
    %v1314 = vpop.f32.mrf.mxu0
    %1315 = vmatprep.mubr.bf16.mxu0 %v1093
    %1316 = vmatmul.mubr.bf16.gmra.mxu0 %v1092
    %v1317 = vpop.f32.mrf.mxu0
    %v1318 = vadd.f32 %v1153, %v1317
    %v1319 = vpop.f32.mrf.mxu0
    %v1320 = vpop.f32.mrf.mxu0
    %v1321 = vadd.f32 %v1153, %v1320
    %v1322 = vpop.f32.mrf.mxu0
    %1323 = vmatprep.mubr.bf16.mxu0 %v1095
    %1324 = vmatmul.mubr.bf16.gmra.mxu0 %v1094
    %v1325 = vpop.f32.mrf.mxu0
    %v1326 = vadd.f32 %v1153, %v1325
    %v1327 = vpop.f32.mrf.mxu0
    %v1328 = vpop.f32.mrf.mxu0
    %v1329 = vadd.f32 %v1153, %v1328
    %v1330 = vpop.f32.mrf.mxu0
    %1331 = vmatprep.mubr.bf16.mxu0 %v1097
    %1332 = vmatmul.mubr.bf16.gmra.mxu0 %v1096
    %v1333 = vpop.f32.mrf.mxu0
    %v1334 = vadd.f32 %v1153, %v1333
    %v1335 = vpop.f32.mrf.mxu0
    %v1336 = vpop.f32.mrf.mxu0
    %v1337 = vadd.f32 %v1153, %v1336
    %v1338 = vpop.f32.mrf.mxu0
    %1339 = vmatprep.mubr.bf16.mxu0 %v1099
    %1340 = vmatmul.mubr.bf16.gmra.mxu0 %v1098
    %v1341 = vpop.f32.mrf.mxu0
    %v1342 = vadd.f32 %v1153, %v1341
    %v1343 = vpop.f32.mrf.mxu0
    %v1344 = vpop.f32.mrf.mxu0
    %v1345 = vadd.f32 %v1153, %v1344
    %v1346 = vpop.f32.mrf.mxu0
    %1347 = vmatprep.mubr.bf16.mxu0 %v1101
    %1348 = vmatmul.mubr.bf16.gmra.mxu0 %v1100
    %v1349 = vpop.f32.mrf.mxu0
    %v1350 = vadd.f32 %v1153, %v1349
    %v1351 = vpop.f32.mrf.mxu0
    %v1352 = vpop.f32.mrf.mxu0
    %v1353 = vadd.f32 %v1153, %v1352
    %v1354 = vpop.f32.mrf.mxu0
    %1355 = vmatprep.mubr.bf16.mxu0 %v1103
    %1356 = vmatmul.mubr.bf16.gmra.mxu0 %v1102
    %v1357 = vpop.f32.mrf.mxu0
    %v1358 = vadd.f32 %v1153, %v1357
    %v1359 = vpop.f32.mrf.mxu0
    %v1360 = vpop.f32.mrf.mxu0
    %v1361 = vadd.f32 %v1153, %v1360
    %v1362 = vpop.f32.mrf.mxu0
    %1363 = vmatprep.mubr.bf16.mxu0 %v1105
    %1364 = vmatmul.mubr.bf16.gmra.mxu0 %v1104
    %v1365 = vpop.f32.mrf.mxu0
    %v1366 = vadd.f32 %v1153, %v1365
    %v1367 = vpop.f32.mrf.mxu0
    %v1368 = vpop.f32.mrf.mxu0
    %v1369 = vadd.f32 %v1153, %v1368
    %v1370 = vpop.f32.mrf.mxu0
    %1371 = vmatprep.mubr.bf16.mxu0 %v1107
    %1372 = vmatmul.mubr.bf16.gmra.mxu0 %v1106
    %v1373 = vpop.f32.mrf.mxu0
    %v1374 = vadd.f32 %v1153, %v1373
    %v1375 = vpop.f32.mrf.mxu0
    %v1376 = vpop.f32.mrf.mxu0
    %v1377 = vadd.f32 %v1153, %v1376
    %v1378 = vpop.f32.mrf.mxu0
    %1379 = vmatprep.mubr.bf16.mxu0 %v1109
    %1380 = vmatmul.mubr.bf16.gmra.mxu0 %v1108
    %v1381 = vpop.f32.mrf.mxu0
    %v1382 = vadd.f32 %v1153, %v1381
    %v1383 = vpop.f32.mrf.mxu0
    %v1384 = vpop.f32.mrf.mxu0
    %v1385 = vadd.f32 %v1153, %v1384
    %v1386 = vpop.f32.mrf.mxu0
    %1387 = vmatprep.mubr.bf16.mxu0 %v1111
    %1388 = vmatmul.mubr.bf16.gmra.mxu0 %v1110
    %v1389 = vpop.f32.mrf.mxu0
    %v1390 = vadd.f32 %v1153, %v1389
    %v1391 = vpop.f32.mrf.mxu0
    %v1392 = vpop.f32.mrf.mxu0
    %v1393 = vadd.f32 %v1153, %v1392
    %v1394 = vpop.f32.mrf.mxu0
    %1395 = vmatprep.mubr.bf16.mxu0 %v1113
    %1396 = vmatmul.mubr.bf16.gmra.mxu0 %v1112
    %v1397 = vpop.f32.mrf.mxu0
    %v1398 = vadd.f32 %v1153, %v1397
    %v1399 = vpop.f32.mrf.mxu0
    %v1400 = vpop.f32.mrf.mxu0
    %v1401 = vadd.f32 %v1153, %v1400
    %v1402 = vpop.f32.mrf.mxu0
    %1403 = vmatprep.mubr.bf16.mxu0 %v1115
    %1404 = vmatmul.mubr.bf16.gmra.mxu0 %v1114
    %v1405 = vpop.f32.mrf.mxu0
    %v1406 = vadd.f32 %v1153, %v1405
    %v1407 = vpop.f32.mrf.mxu0
    %v1408 = vpop.f32.mrf.mxu0
    %v1409 = vadd.f32 %v1153, %v1408
    %v1410 = vpop.f32.mrf.mxu0
    %1411 = vdwg.mxu0
    %v1412 = vmax.f32 %v1286, 0.0
    %v1413 = vmax.f32 %v1289, 0.0
    %v1414 = vmax.f32 %v1294, 0.0
    %v1415 = vmax.f32 %v1297, 0.0
    %v1416 = vmax.f32 %v1302, 0.0
    %v1417 = vmax.f32 %v1305, 0.0
    %v1418 = vmax.f32 %v1310, 0.0
    %v1419 = vmax.f32 %v1313, 0.0
    %v1420 = vmax.f32 %v1318, 0.0
    %v1421 = vmax.f32 %v1321, 0.0
    %v1422 = vmax.f32 %v1326, 0.0
    %v1423 = vmax.f32 %v1329, 0.0
    %v1424 = vmax.f32 %v1334, 0.0
    %v1425 = vmax.f32 %v1337, 0.0
    %v1426 = vmax.f32 %v1342, 0.0
    %v1427 = vmax.f32 %v1345, 0.0
    %v1428 = vmax.f32 %v1350, 0.0
    %v1429 = vmax.f32 %v1353, 0.0
    %v1430 = vmax.f32 %v1358, 0.0
    %v1431 = vmax.f32 %v1361, 0.0
    %v1432 = vmax.f32 %v1366, 0.0
    %v1433 = vmax.f32 %v1369, 0.0
    %v1434 = vmax.f32 %v1374, 0.0
    %v1435 = vmax.f32 %v1377, 0.0
    %v1436 = vmax.f32 %v1382, 0.0
    %v1437 = vmax.f32 %v1385, 0.0
    %v1438 = vmax.f32 %v1390, 0.0
    %v1439 = vmax.f32 %v1393, 0.0
    %v1440 = vmax.f32 %v1398, 0.0
    %v1441 = vmax.f32 %v1401, 0.0
    %v1442 = vmax.f32 %v1406, 0.0
    %v1443 = vmax.f32 %v1409, 0.0
    %v1444 = vld [vmem:[%s7] sm:$0x1]
    %v1445 = vpack.c.bf16 %v1413, %v1412
    %v1446 = vpack.c.bf16 %v1415, %v1414
    %v1447 = vpack.c.bf16 %v1417, %v1416
    %v1448 = vpack.c.bf16 %v1419, %v1418
    %v1449 = vpack.c.bf16 %v1421, %v1420
    %v1450 = vpack.c.bf16 %v1423, %v1422
    %v1451 = vpack.c.bf16 %v1425, %v1424
    %v1452 = vpack.c.bf16 %v1427, %v1426
    %v1453 = vpack.c.bf16 %v1429, %v1428
    %v1454 = vpack.c.bf16 %v1431, %v1430
    %v1455 = vpack.c.bf16 %v1433, %v1432
    %v1456 = vpack.c.bf16 %v1435, %v1434
    %v1457 = vpack.c.bf16 %v1437, %v1436
    %v1458 = vpack.c.bf16 %v1439, %v1438
    %v1459 = vpack.c.bf16 %v1441, %v1440
    %v1460 = vpack.c.bf16 %v1443, %v1442
    %v1461 = vld [vmem:[#allocation2] sm:$0x1]
    %1463 = vset.pattern.permute.xlu0 0
    %1464 = vperm.xlu0 %1463, %v1461
    %v1465 = vpop.permute.xlu0 %1464
    %v1467 = vlaneseq
    %v1468 = vshrl.u32 %v1467, 7
    %v1469 = vsub.s32 0, %v1468
    %v1470 = vrot.slane %v1465, %v1469
    %1471 = vmatprep.subr.bf16.mxu0 0
    %1472 = vmatpush1.bf16.xpose.msra.mxu0 %v1452
    %1473 = vmatprep.subr.bf16.mxu0 0
    %1474 = vmatpush1.bf16.xpose.msra.mxu0 %v1451
    %1475 = vmatprep.subr.bf16.mxu0 0
    %1476 = vmatpush1.bf16.xpose.msra.mxu0 %v1450
    %1477 = vmatprep.subr.bf16.mxu0 0
    %1478 = vmatpush1.bf16.xpose.msra.mxu0 %v1449
    %1479 = vmatprep.subr.bf16.mxu0 0
    %1480 = vmatpush1.bf16.xpose.msra.mxu0 %v1448
    %1481 = vmatprep.subr.bf16.mxu0 0
    %1482 = vmatpush1.bf16.xpose.msra.mxu0 %v1447
    %1483 = vmatprep.subr.bf16.mxu0 0
    %1484 = vmatpush1.bf16.xpose.msra.mxu0 %v1446
    %1485 = vmatprep.subr.bf16.mxu0 0
    %1486 = vmatpush1.bf16.xpose.msra.mxu0 %v1445
    %1487 = vmatprep.subr.bf16.mxu0 0
    %1488 = vmatpush2.bf16.xpose.msra.mxu0 %v1460
    %1489 = vmatprep.subr.bf16.mxu0 0
    %1490 = vmatpush2.bf16.xpose.msra.mxu0 %v1459
    %1491 = vmatprep.subr.bf16.mxu0 0
    %1492 = vmatpush2.bf16.xpose.msra.mxu0 %v1458
    %1493 = vmatprep.subr.bf16.mxu0 0
    %1494 = vmatpush2.bf16.xpose.msra.mxu0 %v1457
    %1495 = vmatprep.subr.bf16.mxu0 0
    %1496 = vmatpush2.bf16.xpose.msra.mxu0 %v1456
    %1497 = vmatprep.subr.bf16.mxu0 0
    %1498 = vmatpush2.bf16.xpose.msra.mxu0 %v1455
    %1499 = vmatprep.subr.bf16.mxu0 0
    %1500 = vmatpush2.bf16.xpose.msra.mxu0 %v1454
    %1501 = vmatprep.subr.bf16.mxu0 0
    %1502 = vmatpush2.bf16.xpose.msra.mxu0 %v1453
    %1503 = vmatprep.mubr.bf16.mxu0 0
    %1504 = vmatmul.mubr.bf16.gmra.mxu0 %v1444
    %v1505 = vpop.f32.mrf.mxu0
    %v1506 = vadd.f32 %v1470, %v1505
    %v1507 = vpop.f32.mrf.mxu0
    %v1508 = vadd.f32 %v1470, %v1507
    %v1509 = vpop.f32.mrf.mxu0
    %v1510 = vpop.f32.mrf.mxu0
    %1511 = vdwg.mxu0
    %v1512 = vsub.f32 0.0, %v1506
    %v1513 = vsub.f32 0.0, %v1508
    %v1514 = vmul.f32 %v1512, 1.442695
    %v1515 = vpow.pop %v1514
    %v1516 = vmul.f32 %v1513, 1.442695
    %v1517 = vpow.pop %v1516
    %v1518 = vadd.f32 %v1515, 1.0
    %v1519 = vadd.f32 %v1517, 1.0
    %v1520 = vrcp.pop %v1518
    %v1521 = vrcp.pop %v1519
    %v1524 = vcombine.low %v1520, %v1521
    %v1526 = vunpack.c.l.s4 1966171168
    %v1527 = vunpack.c.0.s8 %v1526
    %v1528 = vlaneseq
    %v1529 = vshrl.u32 %v1528, 7
    %v1530 = vsub.s32 %v1527, %v1529
    %v1531 = vrot.slane %v1524, %v1530
    %v1533 = vunpack.c.l.s4 1966171168
    %v1534 = vunpack.c.0.s8 %v1533
    %v1535 = vlaneseq
    %v1536 = vshrl.u32 %v1535, 7
    %v1537 = vsub.s32 %v1534, %v1536
    %v1538 = vrot.slane %v1531, %v1537
    %v1540 = vlaneseq
    %vm1541 = vcmp.ge.s32.totalorder %v1540, 0
    %vm1542 = vcmp.lt.s32.totalorder %v1540, 256
    %vm1543 = vmand %vm1541, %vm1542
    %1544 = vst.msk [vmem:[#allocation3] sm:$0x3] %vm1543, %v1538
    // Predicated region
    $region38: #{tpu_custom_call.1} parent=1 // pred_check
      _
    $region39: #{tpu_custom_call.1} parent=1 // pred_check_branch
      %1546 = sbr.rel (0) target = $region41
    $region40: #{tpu_custom_call.1} parent=1 // pred_region
      %s1547 = smul.u32 2, %s13
      %s1549 = ssub.s32 32, 32
      %1550 = vsyncadd [#allocation4], %s1549
      %s1551 = smul.addr %s1547, 16
      %s1552 = scalar_lea.hbm %s9, %s1551
      %s1554 = sshll.u32 [#allocation3], 4
      %s1555 = int_to_ptr.vmem [resolvable:$true] %s1554
      %1557 = dma.vmem_to_hbm [thread:$0]  %s1555, 32, %s1552, [#allocation4]
    $region41: #{tpu_custom_call.1} parent=1 // pred_fallthru
      _
    // Predicated region
    $region42: #{tpu_custom_call.1} parent=1 // pred_check
      _
    $region43: #{tpu_custom_call.1} parent=1 // pred_check_branch
      %1559 = sbr.rel (0) target = $region45
    $region44: #{tpu_custom_call.1} parent=1 // pred_region
      %1560 = dma.done [#allocation4], 32
    $region45: #{tpu_custom_call.1} parent=1 // pred_fallthru
      _
    %1561 = vsyncpa [#allocation4], 1

// kernel: tpu_custom_call.1
$region0: #{tpu_custom_call.1}
  #allocation0 [shape = 'u32[]', space=smem, size = 0x4, offset = 0x4, fixed_abs, tag = 'smem constant byte address 0x4 - core index']
  #allocation1 [shape = 'u32[144,128]{1,0:T(1,128)}', space=vmem, size = 0x12000, scoped, tag = 'internal scratch']
  #allocation2 [shape = 'f32[1,1]{1,0:T(1,128)S(1)}', space=vmem, size = 0x200, scoped, tag = 'scoped memory for tpu_custom_call.1']
  %s0 = inlined_call_operand.vmem [shape: f32[256,160], index: 0, kind: input, shape index: {}]
  %s1 = inlined_call_operand.vmem [shape: bf16[160,256], index: 1, kind: input, shape index: {}]
  %s2 = inlined_call_operand.vmem [shape: f32[1,256], index: 2, kind: input, shape index: {}]
  %s3 = inlined_call_operand.vmem [shape: bf16[256,256], index: 3, kind: input, shape index: {}]
  %s4 = inlined_call_operand.vmem [shape: f32[1,256], index: 4, kind: input, shape index: {}]
  %s5 = inlined_call_operand.vmem [shape: bf16[256,128], index: 5, kind: input, shape index: {}]
  %s6 = inlined_call_operand.vmem [shape: f32[1,128], index: 6, kind: input, shape index: {}]
  %s7 = inlined_call_operand.vmem [shape: bf16[1,128], index: 7, kind: input, shape index: {}]
  %s8 = inlined_call_operand.<no memory space> [shape: f32[1,1], index: 8, kind: input, shape index: {}]
  %s9 = inlined_call_operand.hbm [shape: f32[1,256], index: 9, kind: output, shape index: {}]
  %s10 = sld [smem:[#allocation0]]
  $region46: #{tpu_custom_call.1} parent=0
    _
  %s12 = ssub.s32 1, %s10
  %s13 = scalar_select 0, %s12, %s10
  %v14 = vstv %s8
  %15 = vst [vmem:[#allocation2] sm:$0x1] %v14
  $region1: #{tpu_custom_call.1} parent=0
    #allocation3 [shape = 'u8[1024]{0}', space=vmem, size = 0x400, scoped, tag = 'output window, operand 0, single buffered']
    #allocation4 [shape = 's32[1]{0}', space=sflag, size = 0x4, scoped, tag = 'scoped memory for tpu_custom_call.1']
    %16 = vsyncpa [#allocation4], 0
    // Predicated region
    $region2: #{tpu_custom_call.1} parent=1 // pred_check
      _
    $region3: #{tpu_custom_call.1} parent=1 // pred_check_branch
      %18 = sbr.rel (0) target = $region5
    $region4: #{tpu_custom_call.1} parent=1 // pred_region
      _
    $region5: #{tpu_custom_call.1} parent=1 // pred_fallthru
      _
    // Predicated region
    $region6: #{tpu_custom_call.1} parent=1 // pred_check
      _
    $region7: #{tpu_custom_call.1} parent=1 // pred_check_branch
      %20 = sbr.rel (0) target = $region9
    $region8: #{tpu_custom_call.1} parent=1 // pred_region
      _
    $region9: #{tpu_custom_call.1} parent=1 // pred_fallthru
      _
    // Predicated region
    $region10: #{tpu_custom_call.1} parent=1 // pred_check
      _
    $region11: #{tpu_custom_call.1} parent=1 // pred_check_branch
      %22 = sbr.rel (0) target = $region13
    $region12: #{tpu_custom_call.1} parent=1 // pred_region
      _
    $region13: #{tpu_custom_call.1} parent=1 // pred_fallthru
      _
    // Predicated region
    $region14: #{tpu_custom_call.1} parent=1 // pred_check
      _
    $region15: #{tpu_custom_call.1} parent=1 // pred_check_branch
      %24 = sbr.rel (0) target = $region17
    $region16: #{tpu_custom_call.1} parent=1 // pred_region
      _
    $region17: #{tpu_custom_call.1} parent=1 // pred_fallthru
      _
    // Predicated region
    $region18: #{tpu_custom_call.1} parent=1 // pred_check
      _
    $region19: #{tpu_custom_call.1} parent=1 // pred_check_branch
      %26 = sbr.rel (0) target = $region21
    $region20: #{tpu_custom_call.1} parent=1 // pred_region
      _
    $region21: #{tpu_custom_call.1} parent=1 // pred_fallthru
      _
    // Predicated region
    $region22: #{tpu_custom_call.1} parent=1 // pred_check
      _
    $region23: #{tpu_custom_call.1} parent=1 // pred_check_branch
      %28 = sbr.rel (0) target = $region25
    $region24: #{tpu_custom_call.1} parent=1 // pred_region
      _
    $region25: #{tpu_custom_call.1} parent=1 // pred_fallthru
      _
    // Predicated region
    $region26: #{tpu_custom_call.1} parent=1 // pred_check
      _
    $region27: #{tpu_custom_call.1} parent=1 // pred_check_branch
      %30 = sbr.rel (0) target = $region29
    $region28: #{tpu_custom_call.1} parent=1 // pred_region
      _
    $region29: #{tpu_custom_call.1} parent=1 // pred_fallthru
      _
    // Predicated region
    $region30: #{tpu_custom_call.1} parent=1 // pred_check
      _
    $region31: #{tpu_custom_call.1} parent=1 // pred_check_branch
      %32 = sbr.rel (0) target = $region33
    $region32: #{tpu_custom_call.1} parent=1 // pred_region
      _
    $region33: #{tpu_custom_call.1} parent=1 // pred_fallthru
      _
    // Predicated region
    $region34: #{tpu_custom_call.1} parent=1 // pred_check
      _
    $region35: #{tpu_custom_call.1} parent=1 // pred_check_branch
      %34 = sbr.rel (0) target = $region37
    $region36: #{tpu_custom_call.1} parent=1 // pred_region
      _
    $region37: #{tpu_custom_call.1} parent=1 // pred_fallthru
      _
    %v36 = vld [vmem:[%s0] sm:$0xff]
    %v37 = vld [vmem:[%s0 + $0x8] sm:$0xff]
    %v38 = vld [vmem:[%s0 + $0x10] sm:$0xff]
    %v39 = vld [vmem:[%s0 + $0x18] sm:$0xff]
    %v40 = vld [vmem:[%s0 + $0x20] sm:$0xff]
    %v41 = vld [vmem:[%s0 + $0x28] sm:$0xff]
    %v42 = vld [vmem:[%s0 + $0x30] sm:$0xff]
    %v43 = vld [vmem:[%s0 + $0x38] sm:$0xff]
    %v44 = vld [vmem:[%s0 + $0x40] sm:$0xff]
    %v45 = vld [vmem:[%s0 + $0x48] sm:$0xff]
    %v46 = vld [vmem:[%s0 + $0x50] sm:$0xff]
    %v47 = vld [vmem:[%s0 + $0x58] sm:$0xff]
    %v48 = vld [vmem:[%s0 + $0x60] sm:$0xff]
    %v49 = vld [vmem:[%s0 + $0x68] sm:$0xff]
    %v50 = vld [vmem:[%s0 + $0x70] sm:$0xff]
    %v51 = vld [vmem:[%s0 + $0x78] sm:$0xff]
    %v52 = vld [vmem:[%s0 + $0x80] sm:$0xff]
    %v53 = vld [vmem:[%s0 + $0x88] sm:$0xff]
    %v54 = vld [vmem:[%s0 + $0x90] sm:$0xff]
    %v55 = vld [vmem:[%s0 + $0x98] sm:$0xff]
    %v56 = vld [vmem:[%s0 + $0xa0] sm:$0xff]
    %v57 = vld [vmem:[%s0 + $0xa8] sm:$0xff]
    %v58 = vld [vmem:[%s0 + $0xb0] sm:$0xff]
    %v59 = vld [vmem:[%s0 + $0xb8] sm:$0xff]
    %v60 = vld [vmem:[%s0 + $0xc0] sm:$0xff]
    %v61 = vld [vmem:[%s0 + $0xc8] sm:$0xff]
    %v62 = vld [vmem:[%s0 + $0xd0] sm:$0xff]
    %v63 = vld [vmem:[%s0 + $0xd8] sm:$0xff]
    %v64 = vld [vmem:[%s0 + $0xe0] sm:$0xff]
    %v65 = vld [vmem:[%s0 + $0xe8] sm:$0xff]
    %v66 = vld [vmem:[%s0 + $0xf0] sm:$0xff]
    %v67 = vld [vmem:[%s0 + $0xf8] sm:$0xff]
    %v68 = vld [vmem:[%s0 + $0x100] sm:$0xff]
    %v69 = vld [vmem:[%s0 + $0x108] sm:$0xff]
    %v70 = vld [vmem:[%s0 + $0x110] sm:$0xff]
    %v71 = vld [vmem:[%s0 + $0x118] sm:$0xff]
    %v72 = vld [vmem:[%s0 + $0x120] sm:$0xff]
    %v73 = vld [vmem:[%s0 + $0x128] sm:$0xff]
    %v74 = vld [vmem:[%s0 + $0x130] sm:$0xff]
    %v75 = vld [vmem:[%s0 + $0x138] sm:$0xff]
    %v76 = vld [vmem:[%s0 + $0x140] sm:$0xff]
    %v77 = vld [vmem:[%s0 + $0x148] sm:$0xff]
    %v78 = vld [vmem:[%s0 + $0x150] sm:$0xff]
    %v79 = vld [vmem:[%s0 + $0x158] sm:$0xff]
    %v80 = vld [vmem:[%s0 + $0x160] sm:$0xff]
    %v81 = vld [vmem:[%s0 + $0x168] sm:$0xff]
    %v82 = vld [vmem:[%s0 + $0x170] sm:$0xff]
    %v83 = vld [vmem:[%s0 + $0x178] sm:$0xff]
    %v84 = vld [vmem:[%s0 + $0x180] sm:$0xff]
    %v85 = vld [vmem:[%s0 + $0x188] sm:$0xff]
    %v86 = vld [vmem:[%s0 + $0x190] sm:$0xff]
    %v87 = vld [vmem:[%s0 + $0x198] sm:$0xff]
    %v88 = vld [vmem:[%s0 + $0x1a0] sm:$0xff]
    %v89 = vld [vmem:[%s0 + $0x1a8] sm:$0xff]
    %v90 = vld [vmem:[%s0 + $0x1b0] sm:$0xff]
    %v91 = vld [vmem:[%s0 + $0x1b8] sm:$0xff]
    %v92 = vld [vmem:[%s0 + $0x1c0] sm:$0xff]
    %v93 = vld [vmem:[%s0 + $0x1c8] sm:$0xff]
    %v94 = vld [vmem:[%s0 + $0x1d0] sm:$0xff]
    %v95 = vld [vmem:[%s0 + $0x1d8] sm:$0xff]
    %v96 = vld [vmem:[%s0 + $0x1e0] sm:$0xff]
    %v97 = vld [vmem:[%s0 + $0x1e8] sm:$0xff]
    %v98 = vld [vmem:[%s0 + $0x1f0] sm:$0xff]
    %v99 = vld [vmem:[%s0 + $0x1f8] sm:$0xff]
    %v100 = vpack.c.bf16 %v38, %v36
    %v101 = vpack.c.bf16 %v39, %v37
    %v102 = vpack.c.bf16 %v42, %v40
    %v103 = vpack.c.bf16 %v43, %v41
    %v104 = vpack.c.bf16 %v46, %v44
    %v105 = vpack.c.bf16 %v47, %v45
    %v106 = vpack.c.bf16 %v50, %v48
    %v107 = vpack.c.bf16 %v51, %v49
    %v108 = vpack.c.bf16 %v54, %v52
    %v109 = vpack.c.bf16 %v55, %v53
    %v110 = vpack.c.bf16 %v58, %v56
    %v111 = vpack.c.bf16 %v59, %v57
    %v112 = vpack.c.bf16 %v62, %v60
    %v113 = vpack.c.bf16 %v63, %v61
    %v114 = vpack.c.bf16 %v66, %v64
    %v115 = vpack.c.bf16 %v67, %v65
    %v116 = vpack.c.bf16 %v70, %v68
    %v117 = vpack.c.bf16 %v71, %v69
    %v118 = vpack.c.bf16 %v74, %v72
    %v119 = vpack.c.bf16 %v75, %v73
    %v120 = vpack.c.bf16 %v78, %v76
    %v121 = vpack.c.bf16 %v79, %v77
    %v122 = vpack.c.bf16 %v82, %v80
    %v123 = vpack.c.bf16 %v83, %v81
    %v124 = vpack.c.bf16 %v86, %v84
    %v125 = vpack.c.bf16 %v87, %v85
    %v126 = vpack.c.bf16 %v90, %v88
    %v127 = vpack.c.bf16 %v91, %v89
    %v128 = vpack.c.bf16 %v94, %v92
    %v129 = vpack.c.bf16 %v95, %v93
    %v130 = vpack.c.bf16 %v98, %v96
    %v131 = vpack.c.bf16 %v99, %v97
    %v132 = vld [vmem:[%s1] sm:$0xff]
    %v133 = vld [vmem:[%s1 + $0x8] sm:$0xff]
    %v134 = vld [vmem:[%s1 + $0x10] sm:$0xff]
    %v135 = vld [vmem:[%s1 + $0x18] sm:$0xff]
    %v136 = vld [vmem:[%s1 + $0x20] sm:$0xff]
    %v137 = vld [vmem:[%s1 + $0x28] sm:$0xff]
    %v138 = vld [vmem:[%s1 + $0x30] sm:$0xff]
    %v139 = vld [vmem:[%s1 + $0x38] sm:$0xff]
    %v140 = vld [vmem:[%s1 + $0x40] sm:$0xff]
    %v141 = vld [vmem:[%s1 + $0x48] sm:$0xff]
    %v142 = vld [vmem:[%s1 + $0x50] sm:$0xff]
    %v143 = vld [vmem:[%s1 + $0x58] sm:$0xff]
    %v144 = vld [vmem:[%s1 + $0x60] sm:$0xff]
    %v145 = vld [vmem:[%s1 + $0x68] sm:$0xff]
    %v146 = vld [vmem:[%s1 + $0x70] sm:$0xff]
    %v147 = vld [vmem:[%s1 + $0x78] sm:$0xff]
    %v148 = vld [vmem:[%s1 + $0x80] sm:$0xff]
    %v149 = vld [vmem:[%s1 + $0x88] sm:$0xff]
    %v150 = vld [vmem:[%s1 + $0x90] sm:$0xff]
    %v151 = vld [vmem:[%s1 + $0x98] sm:$0xff]
    %v152 = vld [vmem:[%s2] sm:$0x3]
    %v154 = vlaneseq
    %v155 = vshrl.u32 %v154, 7
    %v156 = vsub.s32 0, %v155
    %v157 = vrot.slane %v152, %v156
    %v158 = vlaneseq
    %v159 = vshrl.u32 %v158, 7
    %v160 = vsub.s32 1, %v159
    %v161 = vrot.slane %v152, %v160
    %v184 = vunpack.c.l.b16 %v132
    %v185 = vunpack.c.h.b16 %v132
    %v186 = vunpack.c.l.b16 %v133
    %v187 = vunpack.c.h.b16 %v133
    %v188 = vunpack.c.l.b16 %v134
    %v189 = vunpack.c.h.b16 %v134
    %v190 = vunpack.c.l.b16 %v135
    %v191 = vunpack.c.h.b16 %v135
    %v192 = vunpack.c.l.b16 %v136
    %v193 = vunpack.c.h.b16 %v136
    %v194 = vunpack.c.l.b16 %v137
    %v195 = vunpack.c.h.b16 %v137
    %v196 = vunpack.c.l.b16 %v138
    %v197 = vunpack.c.h.b16 %v138
    %v198 = vunpack.c.l.b16 %v139
    %v199 = vunpack.c.h.b16 %v139
    %v200 = vunpack.c.l.b16 %v140
    %v201 = vunpack.c.h.b16 %v140
    %v202 = vunpack.c.l.b16 %v141
    %v203 = vunpack.c.h.b16 %v141
    %v204 = vunpack.c.l.b16 %v142
    %v205 = vunpack.c.h.b16 %v142
    %v206 = vunpack.c.l.b16 %v143
    %v207 = vunpack.c.h.b16 %v143
    %v208 = vunpack.c.l.b16 %v144
    %v209 = vunpack.c.h.b16 %v144
    %v210 = vunpack.c.l.b16 %v145
    %v211 = vunpack.c.h.b16 %v145
    %v212 = vunpack.c.l.b16 %v146
    %v213 = vunpack.c.h.b16 %v146
    %v214 = vunpack.c.l.b16 %v147
    %v215 = vunpack.c.h.b16 %v147
    %v216 = vunpack.c.l.b16 %v148
    %v217 = vunpack.c.h.b16 %v148
    %v218 = vunpack.c.l.b16 %v149
    %v219 = vunpack.c.h.b16 %v149
    %v220 = vunpack.c.l.b16 %v150
    %v221 = vunpack.c.h.b16 %v150
    %v222 = vunpack.c.l.b16 %v151
    %v223 = vunpack.c.h.b16 %v151
    %v224 = vpack.c.b16 %v186, %v184
    %v225 = vpack.c.b16 %v187, %v185
    %v226 = vpack.c.b16 %v190, %v188
    %v227 = vpack.c.b16 %v191, %v189
    %v228 = vpack.c.b16 %v194, %v192
    %v229 = vpack.c.b16 %v195, %v193
    %v230 = vpack.c.b16 %v198, %v196
    %v231 = vpack.c.b16 %v199, %v197
    %v232 = vpack.c.b16 %v202, %v200
    %v233 = vpack.c.b16 %v203, %v201
    %v234 = vpack.c.b16 %v206, %v204
    %v235 = vpack.c.b16 %v207, %v205
    %v236 = vpack.c.b16 %v210, %v208
    %v237 = vpack.c.b16 %v211, %v209
    %v238 = vpack.c.b16 %v214, %v212
    %v239 = vpack.c.b16 %v215, %v213
    %v240 = vpack.c.b16 %v218, %v216
    %v241 = vpack.c.b16 %v219, %v217
    %v242 = vpack.c.b16 %v222, %v220
    %v243 = vpack.c.b16 %v223, %v221
    %vm264 = vcmask 261120
    %v266 = vsel %vm264, %v101, 0
    %v269 = vsel %vm264, %v103, 0
    %v272 = vsel %vm264, %v105, 0
    %v275 = vsel %vm264, %v107, 0
    %v278 = vsel %vm264, %v109, 0
    %v281 = vsel %vm264, %v111, 0
    %v284 = vsel %vm264, %v113, 0
    %v287 = vsel %vm264, %v115, 0
    %v290 = vsel %vm264, %v117, 0
    %v293 = vsel %vm264, %v119, 0
    %v296 = vsel %vm264, %v121, 0
    %v299 = vsel %vm264, %v123, 0
    %v302 = vsel %vm264, %v125, 0
    %v305 = vsel %vm264, %v127, 0
    %v308 = vsel %vm264, %v129, 0
    %v311 = vsel %vm264, %v131, 0
    %313 = vmatprep.subr.bf16.mxu0 %v239
    %314 = vmatpush1.bf16.msra.mxu0 %v238
    %315 = vmatprep.subr.bf16.mxu0 %v237
    %316 = vmatpush1.bf16.msra.mxu0 %v236
    %317 = vmatprep.subr.bf16.mxu0 %v235
    %318 = vmatpush1.bf16.msra.mxu0 %v234
    %319 = vmatprep.subr.bf16.mxu0 %v233
    %320 = vmatpush1.bf16.msra.mxu0 %v232
    %321 = vmatprep.subr.bf16.mxu0 %v231
    %322 = vmatpush1.bf16.msra.mxu0 %v230
    %323 = vmatprep.subr.bf16.mxu0 %v229
    %324 = vmatpush1.bf16.msra.mxu0 %v228
    %325 = vmatprep.subr.bf16.mxu0 %v227
    %326 = vmatpush1.bf16.msra.mxu0 %v226
    %327 = vmatprep.subr.bf16.mxu0 %v225
    %328 = vmatpush1.bf16.msra.mxu0 %v224
    %329 = vmatprep.subr.bf16.mxu0 0
    %330 = vmatpush2.bf16.msra.mxu0 0
    %331 = vmatprep.subr.bf16.mxu0 0
    %332 = vmatpush2.bf16.msra.mxu0 0
    %333 = vmatprep.subr.bf16.mxu0 0
    %334 = vmatpush2.bf16.msra.mxu0 0
    %335 = vmatprep.subr.bf16.mxu0 0
    %336 = vmatpush2.bf16.msra.mxu0 0
    %337 = vmatprep.subr.bf16.mxu0 0
    %338 = vmatpush2.bf16.msra.mxu0 0
    %339 = vmatprep.subr.bf16.mxu0 0
    %340 = vmatpush2.bf16.msra.mxu0 0
    %341 = vmatprep.subr.bf16.mxu0 %v243
    %342 = vmatpush2.bf16.msra.mxu0 %v242
    %343 = vmatprep.subr.bf16.mxu0 %v241
    %344 = vmatpush2.bf16.msra.mxu0 %v240
    %345 = vmatprep.mubr.bf16.mxu0 %v266
    %346 = vmatmul.mubr.bf16.gmra.mxu0 %v100
    %v347 = vpop.f32.mrf.mxu0
    %v348 = vadd.f32 %v157, %v347
    %v349 = vpop.f32.mrf.mxu0
    %v350 = vadd.f32 %v161, %v349
    %v351 = vpop.f32.mrf.mxu0
    %v352 = vadd.f32 %v157, %v351
    %v353 = vpop.f32.mrf.mxu0
    %v354 = vadd.f32 %v161, %v353
    %355 = vmatprep.mubr.bf16.mxu0 %v269
    %356 = vmatmul.mubr.bf16.gmra.mxu0 %v102
    %v357 = vpop.f32.mrf.mxu0
    %v358 = vadd.f32 %v157, %v357
    %v359 = vpop.f32.mrf.mxu0
    %v360 = vadd.f32 %v161, %v359
    %v361 = vpop.f32.mrf.mxu0
    %v362 = vadd.f32 %v157, %v361
    %v363 = vpop.f32.mrf.mxu0
    %v364 = vadd.f32 %v161, %v363
    %365 = vmatprep.mubr.bf16.mxu0 %v272
    %366 = vmatmul.mubr.bf16.gmra.mxu0 %v104
    %v367 = vpop.f32.mrf.mxu0
    %v368 = vadd.f32 %v157, %v367
    %v369 = vpop.f32.mrf.mxu0
    %v370 = vadd.f32 %v161, %v369
    %v371 = vpop.f32.mrf.mxu0
    %v372 = vadd.f32 %v157, %v371
    %v373 = vpop.f32.mrf.mxu0
    %v374 = vadd.f32 %v161, %v373
    %375 = vmatprep.mubr.bf16.mxu0 %v275
    %376 = vmatmul.mubr.bf16.gmra.mxu0 %v106
    %v377 = vpop.f32.mrf.mxu0
    %v378 = vadd.f32 %v157, %v377
    %v379 = vpop.f32.mrf.mxu0
    %v380 = vadd.f32 %v161, %v379
    %v381 = vpop.f32.mrf.mxu0
    %v382 = vadd.f32 %v157, %v381
    %v383 = vpop.f32.mrf.mxu0
    %v384 = vadd.f32 %v161, %v383
    %385 = vmatprep.mubr.bf16.mxu0 %v278
    %386 = vmatmul.mubr.bf16.gmra.mxu0 %v108
    %v387 = vpop.f32.mrf.mxu0
    %v388 = vadd.f32 %v157, %v387
    %v389 = vpop.f32.mrf.mxu0
    %v390 = vadd.f32 %v161, %v389
    %v391 = vpop.f32.mrf.mxu0
    %v392 = vadd.f32 %v157, %v391
    %v393 = vpop.f32.mrf.mxu0
    %v394 = vadd.f32 %v161, %v393
    %395 = vmatprep.mubr.bf16.mxu0 %v281
    %396 = vmatmul.mubr.bf16.gmra.mxu0 %v110
    %v397 = vpop.f32.mrf.mxu0
    %v398 = vadd.f32 %v157, %v397
    %v399 = vpop.f32.mrf.mxu0
    %v400 = vadd.f32 %v161, %v399
    %v401 = vpop.f32.mrf.mxu0
    %v402 = vadd.f32 %v157, %v401
    %v403 = vpop.f32.mrf.mxu0
    %v404 = vadd.f32 %v161, %v403
    %405 = vmatprep.mubr.bf16.mxu0 %v284
    %406 = vmatmul.mubr.bf16.gmra.mxu0 %v112
    %v407 = vpop.f32.mrf.mxu0
    %v408 = vadd.f32 %v157, %v407
    %v409 = vpop.f32.mrf.mxu0
    %v410 = vadd.f32 %v161, %v409
    %v411 = vpop.f32.mrf.mxu0
    %v412 = vadd.f32 %v157, %v411
    %v413 = vpop.f32.mrf.mxu0
    %v414 = vadd.f32 %v161, %v413
    %415 = vmatprep.mubr.bf16.mxu0 %v287
    %416 = vmatmul.mubr.bf16.gmra.mxu0 %v114
    %v417 = vpop.f32.mrf.mxu0
    %v418 = vadd.f32 %v157, %v417
    %v419 = vpop.f32.mrf.mxu0
    %v420 = vadd.f32 %v161, %v419
    %v421 = vpop.f32.mrf.mxu0
    %v422 = vadd.f32 %v157, %v421
    %v423 = vpop.f32.mrf.mxu0
    %v424 = vadd.f32 %v161, %v423
    %425 = vmatprep.mubr.bf16.mxu0 %v290
    %426 = vmatmul.mubr.bf16.gmra.mxu0 %v116
    %v427 = vpop.f32.mrf.mxu0
    %v428 = vadd.f32 %v157, %v427
    %v429 = vpop.f32.mrf.mxu0
    %v430 = vadd.f32 %v161, %v429
    %v431 = vpop.f32.mrf.mxu0
    %v432 = vadd.f32 %v157, %v431
    %v433 = vpop.f32.mrf.mxu0
    %v434 = vadd.f32 %v161, %v433
    %435 = vmatprep.mubr.bf16.mxu0 %v293
    %436 = vmatmul.mubr.bf16.gmra.mxu0 %v118
    %v437 = vpop.f32.mrf.mxu0
    %v438 = vadd.f32 %v157, %v437
    %v439 = vpop.f32.mrf.mxu0
    %v440 = vadd.f32 %v161, %v439
    %v441 = vpop.f32.mrf.mxu0
    %v442 = vadd.f32 %v157, %v441
    %v443 = vpop.f32.mrf.mxu0
    %v444 = vadd.f32 %v161, %v443
    %445 = vmatprep.mubr.bf16.mxu0 %v296
    %446 = vmatmul.mubr.bf16.gmra.mxu0 %v120
    %v447 = vpop.f32.mrf.mxu0
    %v448 = vadd.f32 %v157, %v447
    %v449 = vpop.f32.mrf.mxu0
    %v450 = vadd.f32 %v161, %v449
    %v451 = vpop.f32.mrf.mxu0
    %v452 = vadd.f32 %v157, %v451
    %v453 = vpop.f32.mrf.mxu0
    %v454 = vadd.f32 %v161, %v453
    %455 = vmatprep.mubr.bf16.mxu0 %v299
    %456 = vmatmul.mubr.bf16.gmra.mxu0 %v122
    %v457 = vpop.f32.mrf.mxu0
    %v458 = vadd.f32 %v157, %v457
    %v459 = vpop.f32.mrf.mxu0
    %v460 = vadd.f32 %v161, %v459
    %v461 = vpop.f32.mrf.mxu0
    %v462 = vadd.f32 %v157, %v461
    %v463 = vpop.f32.mrf.mxu0
    %v464 = vadd.f32 %v161, %v463
    %465 = vmatprep.mubr.bf16.mxu0 %v302
    %466 = vmatmul.mubr.bf16.gmra.mxu0 %v124
    %v467 = vpop.f32.mrf.mxu0
    %v468 = vadd.f32 %v157, %v467
    %v469 = vpop.f32.mrf.mxu0
    %v470 = vadd.f32 %v161, %v469
    %v471 = vpop.f32.mrf.mxu0
    %v472 = vadd.f32 %v157, %v471
    %v473 = vpop.f32.mrf.mxu0
    %v474 = vadd.f32 %v161, %v473
    %475 = vmatprep.mubr.bf16.mxu0 %v305
    %476 = vmatmul.mubr.bf16.gmra.mxu0 %v126
    %v477 = vpop.f32.mrf.mxu0
    %v478 = vadd.f32 %v157, %v477
    %v479 = vpop.f32.mrf.mxu0
    %v480 = vadd.f32 %v161, %v479
    %v481 = vpop.f32.mrf.mxu0
    %v482 = vadd.f32 %v157, %v481
    %v483 = vpop.f32.mrf.mxu0
    %v484 = vadd.f32 %v161, %v483
    %485 = vmatprep.mubr.bf16.mxu0 %v308
    %486 = vmatmul.mubr.bf16.gmra.mxu0 %v128
    %v487 = vpop.f32.mrf.mxu0
    %v488 = vadd.f32 %v157, %v487
    %v489 = vpop.f32.mrf.mxu0
    %v490 = vadd.f32 %v161, %v489
    %v491 = vpop.f32.mrf.mxu0
    %v492 = vadd.f32 %v157, %v491
    %v493 = vpop.f32.mrf.mxu0
    %v494 = vadd.f32 %v161, %v493
    %495 = vmatprep.mubr.bf16.mxu0 %v311
    %496 = vmatmul.mubr.bf16.gmra.mxu0 %v130
    %v497 = vpop.f32.mrf.mxu0
    %v498 = vadd.f32 %v157, %v497
    %v499 = vpop.f32.mrf.mxu0
    %v500 = vadd.f32 %v161, %v499
    %v501 = vpop.f32.mrf.mxu0
    %v502 = vadd.f32 %v157, %v501
    %v503 = vpop.f32.mrf.mxu0
    %v504 = vadd.f32 %v161, %v503
    %505 = vdwg.mxu0
    %v506 = vmax.f32 %v348, 0.0
    %v507 = vmax.f32 %v350, 0.0
    %v508 = vmax.f32 %v352, 0.0
    %v509 = vmax.f32 %v354, 0.0
    %v510 = vmax.f32 %v358, 0.0
    %v511 = vmax.f32 %v360, 0.0
    %v512 = vmax.f32 %v362, 0.0
    %v513 = vmax.f32 %v364, 0.0
    %v514 = vmax.f32 %v368, 0.0
    %v515 = vmax.f32 %v370, 0.0
    %v516 = vmax.f32 %v372, 0.0
    %v517 = vmax.f32 %v374, 0.0
    %v518 = vmax.f32 %v378, 0.0
    %v519 = vmax.f32 %v380, 0.0
    %v520 = vmax.f32 %v382, 0.0
    %v521 = vmax.f32 %v384, 0.0
    %v522 = vmax.f32 %v388, 0.0
    %v523 = vmax.f32 %v390, 0.0
    %v524 = vmax.f32 %v392, 0.0
    %v525 = vmax.f32 %v394, 0.0
    %v526 = vmax.f32 %v398, 0.0
    %v527 = vmax.f32 %v400, 0.0
    %v528 = vmax.f32 %v402, 0.0
    %v529 = vmax.f32 %v404, 0.0
    %v530 = vmax.f32 %v408, 0.0
    %v531 = vmax.f32 %v410, 0.0
    %v532 = vmax.f32 %v412, 0.0
    %v533 = vmax.f32 %v414, 0.0
    %v534 = vmax.f32 %v418, 0.0
    %v535 = vmax.f32 %v420, 0.0
    %v536 = vmax.f32 %v422, 0.0
    %v537 = vmax.f32 %v424, 0.0
    %v538 = vmax.f32 %v428, 0.0
    %v539 = vmax.f32 %v430, 0.0
    %v540 = vmax.f32 %v432, 0.0
    %v541 = vmax.f32 %v434, 0.0
    %v542 = vmax.f32 %v438, 0.0
    %v543 = vmax.f32 %v440, 0.0
    %v544 = vmax.f32 %v442, 0.0
    %v545 = vmax.f32 %v444, 0.0
    %v546 = vmax.f32 %v448, 0.0
    %v547 = vmax.f32 %v450, 0.0
    %v548 = vmax.f32 %v452, 0.0
    %v549 = vmax.f32 %v454, 0.0
    %v550 = vmax.f32 %v458, 0.0
    %v551 = vmax.f32 %v460, 0.0
    %v552 = vmax.f32 %v462, 0.0
    %v553 = vmax.f32 %v464, 0.0
    %v554 = vmax.f32 %v468, 0.0
    %v555 = vmax.f32 %v470, 0.0
    %v556 = vmax.f32 %v472, 0.0
    %v557 = vmax.f32 %v474, 0.0
    %v558 = vmax.f32 %v478, 0.0
    %v559 = vmax.f32 %v480, 0.0
    %v560 = vmax.f32 %v482, 0.0
    %v561 = vmax.f32 %v484, 0.0
    %v562 = vmax.f32 %v488, 0.0
    %v563 = vmax.f32 %v490, 0.0
    %v564 = vmax.f32 %v492, 0.0
    %v565 = vmax.f32 %v494, 0.0
    %v566 = vmax.f32 %v498, 0.0
    %v567 = vmax.f32 %v500, 0.0
    %v568 = vmax.f32 %v502, 0.0
    %v569 = vmax.f32 %v504, 0.0
    %v570 = vpack.c.bf16 %v508, %v506
    %v571 = vpack.c.bf16 %v509, %v507
    %v572 = vpack.c.bf16 %v512, %v510
    %v573 = vpack.c.bf16 %v513, %v511
    %v574 = vpack.c.bf16 %v516, %v514
    %v575 = vpack.c.bf16 %v517, %v515
    %v576 = vpack.c.bf16 %v520, %v518
    %v577 = vpack.c.bf16 %v521, %v519
    %v578 = vpack.c.bf16 %v524, %v522
    %v579 = vpack.c.bf16 %v525, %v523
    %v580 = vpack.c.bf16 %v528, %v526
    %v581 = vpack.c.bf16 %v529, %v527
    %v582 = vpack.c.bf16 %v532, %v530
    %v583 = vpack.c.bf16 %v533, %v531
    %v584 = vpack.c.bf16 %v536, %v534
    %v585 = vpack.c.bf16 %v537, %v535
    %v586 = vpack.c.bf16 %v540, %v538
    %v587 = vpack.c.bf16 %v541, %v539
    %v588 = vpack.c.bf16 %v544, %v542
    %v589 = vpack.c.bf16 %v545, %v543
    %v590 = vpack.c.bf16 %v548, %v546
    %v591 = vpack.c.bf16 %v549, %v547
    %v592 = vpack.c.bf16 %v552, %v550
    %v593 = vpack.c.bf16 %v553, %v551
    %v594 = vpack.c.bf16 %v556, %v554
    %v595 = vpack.c.bf16 %v557, %v555
    %v596 = vpack.c.bf16 %v560, %v558
    %v597 = vpack.c.bf16 %v561, %v559
    %v598 = vpack.c.bf16 %v564, %v562
    %v599 = vpack.c.bf16 %v565, %v563
    %v600 = vpack.c.bf16 %v568, %v566
    %v601 = vpack.c.bf16 %v569, %v567
    %v602 = vld [vmem:[%s3] sm:$0xff]
    %v603 = vld [vmem:[%s3 + $0x8] sm:$0xff]
    %v604 = vld [vmem:[%s3 + $0x10] sm:$0xff]
    %v605 = vld [vmem:[%s3 + $0x18] sm:$0xff]
    %v606 = vld [vmem:[%s3 + $0x20] sm:$0xff]
    %v607 = vld [vmem:[%s3 + $0x28] sm:$0xff]
    %v608 = vld [vmem:[%s3 + $0x30] sm:$0xff]
    %v609 = vld [vmem:[%s3 + $0x38] sm:$0xff]
    %v610 = vld [vmem:[%s3 + $0x40] sm:$0xff]
    %v611 = vld [vmem:[%s3 + $0x48] sm:$0xff]
    %v612 = vld [vmem:[%s3 + $0x50] sm:$0xff]
    %v613 = vld [vmem:[%s3 + $0x58] sm:$0xff]
    %v614 = vld [vmem:[%s3 + $0x60] sm:$0xff]
    %v615 = vld [vmem:[%s3 + $0x68] sm:$0xff]
    %v616 = vld [vmem:[%s3 + $0x70] sm:$0xff]
    %v617 = vld [vmem:[%s3 + $0x78] sm:$0xff]
    %v618 = vld [vmem:[%s3 + $0x80] sm:$0xff]
    %v619 = vld [vmem:[%s3 + $0x88] sm:$0xff]
    %v620 = vld [vmem:[%s3 + $0x90] sm:$0xff]
    %v621 = vld [vmem:[%s3 + $0x98] sm:$0xff]
    %v622 = vld [vmem:[%s3 + $0xa0] sm:$0xff]
    %v623 = vld [vmem:[%s3 + $0xa8] sm:$0xff]
    %v624 = vld [vmem:[%s3 + $0xb0] sm:$0xff]
    %v625 = vld [vmem:[%s3 + $0xb8] sm:$0xff]
    %v626 = vld [vmem:[%s3 + $0xc0] sm:$0xff]
    %v627 = vld [vmem:[%s3 + $0xc8] sm:$0xff]
    %v628 = vld [vmem:[%s3 + $0xd0] sm:$0xff]
    %v629 = vld [vmem:[%s3 + $0xd8] sm:$0xff]
    %v630 = vld [vmem:[%s3 + $0xe0] sm:$0xff]
    %v631 = vld [vmem:[%s3 + $0xe8] sm:$0xff]
    %v632 = vld [vmem:[%s3 + $0xf0] sm:$0xff]
    %v633 = vld [vmem:[%s3 + $0xf8] sm:$0xff]
    %v634 = vld [vmem:[%s4] sm:$0x3]
    %v636 = vlaneseq
    %v637 = vshrl.u32 %v636, 7
    %v638 = vsub.s32 0, %v637
    %v639 = vrot.slane %v634, %v638
    %v640 = vlaneseq
    %v641 = vshrl.u32 %v640, 7
    %v642 = vsub.s32 1, %v641
    %v643 = vrot.slane %v634, %v642
    %v678 = vunpack.c.l.b16 %v602
    %v679 = vunpack.c.h.b16 %v602
    %v680 = vunpack.c.l.b16 %v603
    %v681 = vunpack.c.h.b16 %v603
    %v682 = vunpack.c.l.b16 %v604
    %v683 = vunpack.c.h.b16 %v604
    %v684 = vunpack.c.l.b16 %v605
    %v685 = vunpack.c.h.b16 %v605
    %v686 = vunpack.c.l.b16 %v606
    %v687 = vunpack.c.h.b16 %v606
    %v688 = vunpack.c.l.b16 %v607
    %v689 = vunpack.c.h.b16 %v607
    %v690 = vunpack.c.l.b16 %v608
    %v691 = vunpack.c.h.b16 %v608
    %v692 = vunpack.c.l.b16 %v609
    %v693 = vunpack.c.h.b16 %v609
    %v694 = vunpack.c.l.b16 %v610
    %v695 = vunpack.c.h.b16 %v610
    %v696 = vunpack.c.l.b16 %v611
    %v697 = vunpack.c.h.b16 %v611
    %v698 = vunpack.c.l.b16 %v612
    %v699 = vunpack.c.h.b16 %v612
    %v700 = vunpack.c.l.b16 %v613
    %v701 = vunpack.c.h.b16 %v613
    %v702 = vunpack.c.l.b16 %v614
    %v703 = vunpack.c.h.b16 %v614
    %v704 = vunpack.c.l.b16 %v615
    %v705 = vunpack.c.h.b16 %v615
    %v706 = vunpack.c.l.b16 %v616
    %v707 = vunpack.c.h.b16 %v616
    %v708 = vunpack.c.l.b16 %v617
    %v709 = vunpack.c.h.b16 %v617
    %v710 = vunpack.c.l.b16 %v618
    %v711 = vunpack.c.h.b16 %v618
    %v712 = vunpack.c.l.b16 %v619
    %v713 = vunpack.c.h.b16 %v619
    %v714 = vunpack.c.l.b16 %v620
    %v715 = vunpack.c.h.b16 %v620
    %v716 = vunpack.c.l.b16 %v621
    %v717 = vunpack.c.h.b16 %v621
    %v718 = vunpack.c.l.b16 %v622
    %v719 = vunpack.c.h.b16 %v622
    %v720 = vunpack.c.l.b16 %v623
    %v721 = vunpack.c.h.b16 %v623
    %v722 = vunpack.c.l.b16 %v624
    %v723 = vunpack.c.h.b16 %v624
    %v724 = vunpack.c.l.b16 %v625
    %v725 = vunpack.c.h.b16 %v625
    %v726 = vunpack.c.l.b16 %v626
    %v727 = vunpack.c.h.b16 %v626
    %v728 = vunpack.c.l.b16 %v627
    %v729 = vunpack.c.h.b16 %v627
    %v730 = vunpack.c.l.b16 %v628
    %v731 = vunpack.c.h.b16 %v628
    %v732 = vunpack.c.l.b16 %v629
    %v733 = vunpack.c.h.b16 %v629
    %v734 = vunpack.c.l.b16 %v630
    %v735 = vunpack.c.h.b16 %v630
    %v736 = vunpack.c.l.b16 %v631
    %v737 = vunpack.c.h.b16 %v631
    %v738 = vunpack.c.l.b16 %v632
    %v739 = vunpack.c.h.b16 %v632
    %v740 = vunpack.c.l.b16 %v633
    %v741 = vunpack.c.h.b16 %v633
    %v742 = vpack.c.b16 %v680, %v678
    %v743 = vpack.c.b16 %v681, %v679
    %v744 = vpack.c.b16 %v684, %v682
    %v745 = vpack.c.b16 %v685, %v683
    %v746 = vpack.c.b16 %v688, %v686
    %v747 = vpack.c.b16 %v689, %v687
    %v748 = vpack.c.b16 %v692, %v690
    %v749 = vpack.c.b16 %v693, %v691
    %v750 = vpack.c.b16 %v696, %v694
    %v751 = vpack.c.b16 %v697, %v695
    %v752 = vpack.c.b16 %v700, %v698
    %v753 = vpack.c.b16 %v701, %v699
    %v754 = vpack.c.b16 %v704, %v702
    %v755 = vpack.c.b16 %v705, %v703
    %v756 = vpack.c.b16 %v708, %v706
    %v757 = vpack.c.b16 %v709, %v707
    %v758 = vpack.c.b16 %v712, %v710
    %v759 = vpack.c.b16 %v713, %v711
    %v760 = vpack.c.b16 %v716, %v714
    %v761 = vpack.c.b16 %v717, %v715
    %v762 = vpack.c.b16 %v720, %v718
    %v763 = vpack.c.b16 %v721, %v719
    %v764 = vpack.c.b16 %v724, %v722
    %v765 = vpack.c.b16 %v725, %v723
    %v766 = vpack.c.b16 %v728, %v726
    %v767 = vpack.c.b16 %v729, %v727
    %v768 = vpack.c.b16 %v732, %v730
    %v769 = vpack.c.b16 %v733, %v731
    %v770 = vpack.c.b16 %v736, %v734
    %v771 = vpack.c.b16 %v737, %v735
    %v772 = vpack.c.b16 %v740, %v738
    %v773 = vpack.c.b16 %v741, %v739
    %806 = vmatprep.subr.bf16.mxu0 %v757
    %807 = vmatpush1.bf16.msra.mxu0 %v756
    %808 = vmatprep.subr.bf16.mxu0 %v755
    %809 = vmatpush1.bf16.msra.mxu0 %v754
    %810 = vmatprep.subr.bf16.mxu0 %v753
    %811 = vmatpush1.bf16.msra.mxu0 %v752
    %812 = vmatprep.subr.bf16.mxu0 %v751
    %813 = vmatpush1.bf16.msra.mxu0 %v750
    %814 = vmatprep.subr.bf16.mxu0 %v749
    %815 = vmatpush1.bf16.msra.mxu0 %v748
    %816 = vmatprep.subr.bf16.mxu0 %v747
    %817 = vmatpush1.bf16.msra.mxu0 %v746
    %818 = vmatprep.subr.bf16.mxu0 %v745
    %819 = vmatpush1.bf16.msra.mxu0 %v744
    %820 = vmatprep.subr.bf16.mxu0 %v743
    %821 = vmatpush1.bf16.msra.mxu0 %v742
    %822 = vmatprep.subr.bf16.mxu0 %v773
    %823 = vmatpush2.bf16.msra.mxu0 %v772
    %824 = vmatprep.subr.bf16.mxu0 %v771
    %825 = vmatpush2.bf16.msra.mxu0 %v770
    %826 = vmatprep.subr.bf16.mxu0 %v769
    %827 = vmatpush2.bf16.msra.mxu0 %v768
    %828 = vmatprep.subr.bf16.mxu0 %v767
    %829 = vmatpush2.bf16.msra.mxu0 %v766
    %830 = vmatprep.subr.bf16.mxu0 %v765
    %831 = vmatpush2.bf16.msra.mxu0 %v764
    %832 = vmatprep.subr.bf16.mxu0 %v763
    %833 = vmatpush2.bf16.msra.mxu0 %v762
    %834 = vmatprep.subr.bf16.mxu0 %v761
    %835 = vmatpush2.bf16.msra.mxu0 %v760
    %836 = vmatprep.subr.bf16.mxu0 %v759
    %837 = vmatpush2.bf16.msra.mxu0 %v758
    %838 = vmatprep.mubr.bf16.mxu0 %v571
    %839 = vmatmul.mubr.bf16.gmra.mxu0 %v570
    %v840 = vpop.f32.mrf.mxu0
    %v841 = vadd.f32 %v639, %v840
    %v842 = vpop.f32.mrf.mxu0
    %v843 = vadd.f32 %v643, %v842
    %v844 = vpop.f32.mrf.mxu0
    %v845 = vadd.f32 %v639, %v844
    %v846 = vpop.f32.mrf.mxu0
    %v847 = vadd.f32 %v643, %v846
    %848 = vmatprep.mubr.bf16.mxu0 %v573
    %849 = vmatmul.mubr.bf16.gmra.mxu0 %v572
    %v850 = vpop.f32.mrf.mxu0
    %v851 = vadd.f32 %v639, %v850
    %v852 = vpop.f32.mrf.mxu0
    %v853 = vadd.f32 %v643, %v852
    %v854 = vpop.f32.mrf.mxu0
    %v855 = vadd.f32 %v639, %v854
    %v856 = vpop.f32.mrf.mxu0
    %v857 = vadd.f32 %v643, %v856
    %858 = vmatprep.mubr.bf16.mxu0 %v575
    %859 = vmatmul.mubr.bf16.gmra.mxu0 %v574
    %v860 = vpop.f32.mrf.mxu0
    %v861 = vadd.f32 %v639, %v860
    %v862 = vpop.f32.mrf.mxu0
    %v863 = vadd.f32 %v643, %v862
    %v864 = vpop.f32.mrf.mxu0
    %v865 = vadd.f32 %v639, %v864
    %v866 = vpop.f32.mrf.mxu0
    %v867 = vadd.f32 %v643, %v866
    %868 = vmatprep.mubr.bf16.mxu0 %v577
    %869 = vmatmul.mubr.bf16.gmra.mxu0 %v576
    %v870 = vpop.f32.mrf.mxu0
    %v871 = vadd.f32 %v639, %v870
    %v872 = vpop.f32.mrf.mxu0
    %v873 = vadd.f32 %v643, %v872
    %v874 = vpop.f32.mrf.mxu0
    %v875 = vadd.f32 %v639, %v874
    %v876 = vpop.f32.mrf.mxu0
    %v877 = vadd.f32 %v643, %v876
    %878 = vmatprep.mubr.bf16.mxu0 %v579
    %879 = vmatmul.mubr.bf16.gmra.mxu0 %v578
    %v880 = vpop.f32.mrf.mxu0
    %v881 = vadd.f32 %v639, %v880
    %v882 = vpop.f32.mrf.mxu0
    %v883 = vadd.f32 %v643, %v882
    %v884 = vpop.f32.mrf.mxu0
    %v885 = vadd.f32 %v639, %v884
    %v886 = vpop.f32.mrf.mxu0
    %v887 = vadd.f32 %v643, %v886
    %888 = vmatprep.mubr.bf16.mxu0 %v581
    %889 = vmatmul.mubr.bf16.gmra.mxu0 %v580
    %v890 = vpop.f32.mrf.mxu0
    %v891 = vadd.f32 %v639, %v890
    %v892 = vpop.f32.mrf.mxu0
    %v893 = vadd.f32 %v643, %v892
    %v894 = vpop.f32.mrf.mxu0
    %v895 = vadd.f32 %v639, %v894
    %v896 = vpop.f32.mrf.mxu0
    %v897 = vadd.f32 %v643, %v896
    %898 = vmatprep.mubr.bf16.mxu0 %v583
    %899 = vmatmul.mubr.bf16.gmra.mxu0 %v582
    %v900 = vpop.f32.mrf.mxu0
    %v901 = vadd.f32 %v639, %v900
    %v902 = vpop.f32.mrf.mxu0
    %v903 = vadd.f32 %v643, %v902
    %v904 = vpop.f32.mrf.mxu0
    %v905 = vadd.f32 %v639, %v904
    %v906 = vpop.f32.mrf.mxu0
    %v907 = vadd.f32 %v643, %v906
    %908 = vmatprep.mubr.bf16.mxu0 %v585
    %909 = vmatmul.mubr.bf16.gmra.mxu0 %v584
    %v910 = vpop.f32.mrf.mxu0
    %v911 = vadd.f32 %v639, %v910
    %v912 = vpop.f32.mrf.mxu0
    %v913 = vadd.f32 %v643, %v912
    %v914 = vpop.f32.mrf.mxu0
    %v915 = vadd.f32 %v639, %v914
    %v916 = vpop.f32.mrf.mxu0
    %v917 = vadd.f32 %v643, %v916
    %918 = vmatprep.mubr.bf16.mxu0 %v587
    %919 = vmatmul.mubr.bf16.gmra.mxu0 %v586
    %v920 = vpop.f32.mrf.mxu0
    %v921 = vadd.f32 %v639, %v920
    %v922 = vpop.f32.mrf.mxu0
    %v923 = vadd.f32 %v643, %v922
    %v924 = vpop.f32.mrf.mxu0
    %v925 = vadd.f32 %v639, %v924
    %v926 = vpop.f32.mrf.mxu0
    %v927 = vadd.f32 %v643, %v926
    %928 = vmatprep.mubr.bf16.mxu0 %v589
    %929 = vmatmul.mubr.bf16.gmra.mxu0 %v588
    %v930 = vpop.f32.mrf.mxu0
    %v931 = vadd.f32 %v639, %v930
    %v932 = vpop.f32.mrf.mxu0
    %v933 = vadd.f32 %v643, %v932
    %v934 = vpop.f32.mrf.mxu0
    %v935 = vadd.f32 %v639, %v934
    %v936 = vpop.f32.mrf.mxu0
    %v937 = vadd.f32 %v643, %v936
    %938 = vmatprep.mubr.bf16.mxu0 %v591
    %939 = vmatmul.mubr.bf16.gmra.mxu0 %v590
    %v940 = vpop.f32.mrf.mxu0
    %v941 = vadd.f32 %v639, %v940
    %v942 = vpop.f32.mrf.mxu0
    %v943 = vadd.f32 %v643, %v942
    %v944 = vpop.f32.mrf.mxu0
    %v945 = vadd.f32 %v639, %v944
    %v946 = vpop.f32.mrf.mxu0
    %v947 = vadd.f32 %v643, %v946
    %948 = vmatprep.mubr.bf16.mxu0 %v593
    %949 = vmatmul.mubr.bf16.gmra.mxu0 %v592
    %v950 = vpop.f32.mrf.mxu0
    %v951 = vadd.f32 %v639, %v950
    %v952 = vpop.f32.mrf.mxu0
    %v953 = vadd.f32 %v643, %v952
    %v954 = vpop.f32.mrf.mxu0
    %v955 = vadd.f32 %v639, %v954
    %v956 = vpop.f32.mrf.mxu0
    %v957 = vadd.f32 %v643, %v956
    %958 = vmatprep.mubr.bf16.mxu0 %v595
    %959 = vmatmul.mubr.bf16.gmra.mxu0 %v594
    %v960 = vpop.f32.mrf.mxu0
    %v961 = vadd.f32 %v639, %v960
    %v962 = vpop.f32.mrf.mxu0
    %v963 = vadd.f32 %v643, %v962
    %v964 = vpop.f32.mrf.mxu0
    %v965 = vadd.f32 %v639, %v964
    %v966 = vpop.f32.mrf.mxu0
    %v967 = vadd.f32 %v643, %v966
    %968 = vmatprep.mubr.bf16.mxu0 %v597
    %969 = vmatmul.mubr.bf16.gmra.mxu0 %v596
    %v970 = vpop.f32.mrf.mxu0
    %v971 = vadd.f32 %v639, %v970
    %v972 = vpop.f32.mrf.mxu0
    %v973 = vadd.f32 %v643, %v972
    %v974 = vpop.f32.mrf.mxu0
    %v975 = vadd.f32 %v639, %v974
    %v976 = vpop.f32.mrf.mxu0
    %v977 = vadd.f32 %v643, %v976
    %978 = vmatprep.mubr.bf16.mxu0 %v599
    %979 = vmatmul.mubr.bf16.gmra.mxu0 %v598
    %v980 = vpop.f32.mrf.mxu0
    %v981 = vadd.f32 %v639, %v980
    %v982 = vpop.f32.mrf.mxu0
    %v983 = vadd.f32 %v643, %v982
    %v984 = vpop.f32.mrf.mxu0
    %v985 = vadd.f32 %v639, %v984
    %v986 = vpop.f32.mrf.mxu0
    %v987 = vadd.f32 %v643, %v986
    %988 = vmatprep.mubr.bf16.mxu0 %v601
    %989 = vmatmul.mubr.bf16.gmra.mxu0 %v600
    %v990 = vpop.f32.mrf.mxu0
    %v991 = vadd.f32 %v639, %v990
    %v992 = vpop.f32.mrf.mxu0
    %v993 = vadd.f32 %v643, %v992
    %v994 = vpop.f32.mrf.mxu0
    %v995 = vadd.f32 %v639, %v994
    %v996 = vpop.f32.mrf.mxu0
    %v997 = vadd.f32 %v643, %v996
    %998 = vdwg.mxu0
    %v999 = vmax.f32 %v841, 0.0
    %v1000 = vmax.f32 %v843, 0.0
    %v1001 = vmax.f32 %v845, 0.0
    %v1002 = vmax.f32 %v847, 0.0
    %v1003 = vmax.f32 %v851, 0.0
    %v1004 = vmax.f32 %v853, 0.0
    %v1005 = vmax.f32 %v855, 0.0
    %v1006 = vmax.f32 %v857, 0.0
    %v1007 = vmax.f32 %v861, 0.0
    %v1008 = vmax.f32 %v863, 0.0
    %v1009 = vmax.f32 %v865, 0.0
    %v1010 = vmax.f32 %v867, 0.0
    %v1011 = vmax.f32 %v871, 0.0
    %v1012 = vmax.f32 %v873, 0.0
    %v1013 = vmax.f32 %v875, 0.0
    %v1014 = vmax.f32 %v877, 0.0
    %v1015 = vmax.f32 %v881, 0.0
    %v1016 = vmax.f32 %v883, 0.0
    %v1017 = vmax.f32 %v885, 0.0
    %v1018 = vmax.f32 %v887, 0.0
    %v1019 = vmax.f32 %v891, 0.0
    %v1020 = vmax.f32 %v893, 0.0
    %v1021 = vmax.f32 %v895, 0.0
    %v1022 = vmax.f32 %v897, 0.0
    %v1023 = vmax.f32 %v901, 0.0
    %v1024 = vmax.f32 %v903, 0.0
    %v1025 = vmax.f32 %v905, 0.0
    %v1026 = vmax.f32 %v907, 0.0
    %v1027 = vmax.f32 %v911, 0.0
    %v1028 = vmax.f32 %v913, 0.0
    %v1029 = vmax.f32 %v915, 0.0
    %v1030 = vmax.f32 %v917, 0.0
    %v1031 = vmax.f32 %v921, 0.0
    %v1032 = vmax.f32 %v923, 0.0
    %v1033 = vmax.f32 %v925, 0.0
    %v1034 = vmax.f32 %v927, 0.0
    %v1035 = vmax.f32 %v931, 0.0
    %v1036 = vmax.f32 %v933, 0.0
    %v1037 = vmax.f32 %v935, 0.0
    %v1038 = vmax.f32 %v937, 0.0
    %v1039 = vmax.f32 %v941, 0.0
    %v1040 = vmax.f32 %v943, 0.0
    %v1041 = vmax.f32 %v945, 0.0
    %v1042 = vmax.f32 %v947, 0.0
    %v1043 = vmax.f32 %v951, 0.0
    %v1044 = vmax.f32 %v953, 0.0
    %v1045 = vmax.f32 %v955, 0.0
    %v1046 = vmax.f32 %v957, 0.0
    %v1047 = vmax.f32 %v961, 0.0
    %v1048 = vmax.f32 %v963, 0.0
    %v1049 = vmax.f32 %v965, 0.0
    %v1050 = vmax.f32 %v967, 0.0
    %v1051 = vmax.f32 %v971, 0.0
    %v1052 = vmax.f32 %v973, 0.0
    %v1053 = vmax.f32 %v975, 0.0
    %v1054 = vmax.f32 %v977, 0.0
    %v1055 = vmax.f32 %v981, 0.0
    %v1056 = vmax.f32 %v983, 0.0
    %v1057 = vmax.f32 %v985, 0.0
    %v1058 = vmax.f32 %v987, 0.0
    %v1059 = vmax.f32 %v991, 0.0
    %v1060 = vmax.f32 %v993, 0.0
    %v1061 = vmax.f32 %v995, 0.0
    %v1062 = vmax.f32 %v997, 0.0
    %v1063 = vpack.c.bf16 %v1001, %v999
    %v1064 = vpack.c.bf16 %v1002, %v1000
    %v1065 = vpack.c.bf16 %v1005, %v1003
    %v1066 = vpack.c.bf16 %v1006, %v1004
    %v1067 = vpack.c.bf16 %v1009, %v1007
    %v1068 = vpack.c.bf16 %v1010, %v1008
    %v1069 = vpack.c.bf16 %v1013, %v1011
    %v1070 = vpack.c.bf16 %v1014, %v1012
    %v1071 = vpack.c.bf16 %v1017, %v1015
    %v1072 = vpack.c.bf16 %v1018, %v1016
    %v1073 = vpack.c.bf16 %v1021, %v1019
    %v1074 = vpack.c.bf16 %v1022, %v1020
    %v1075 = vpack.c.bf16 %v1025, %v1023
    %v1076 = vpack.c.bf16 %v1026, %v1024
    %v1077 = vpack.c.bf16 %v1029, %v1027
    %v1078 = vpack.c.bf16 %v1030, %v1028
    %v1079 = vpack.c.bf16 %v1033, %v1031
    %v1080 = vpack.c.bf16 %v1034, %v1032
    %v1081 = vpack.c.bf16 %v1037, %v1035
    %v1082 = vpack.c.bf16 %v1038, %v1036
    %v1083 = vpack.c.bf16 %v1041, %v1039
    %v1084 = vpack.c.bf16 %v1042, %v1040
    %v1085 = vpack.c.bf16 %v1045, %v1043
    %v1086 = vpack.c.bf16 %v1046, %v1044
    %v1087 = vpack.c.bf16 %v1049, %v1047
    %v1088 = vpack.c.bf16 %v1050, %v1048
    %v1089 = vpack.c.bf16 %v1053, %v1051
    %v1090 = vpack.c.bf16 %v1054, %v1052
    %v1091 = vpack.c.bf16 %v1057, %v1055
    %v1092 = vpack.c.bf16 %v1058, %v1056
    %v1093 = vpack.c.bf16 %v1061, %v1059
    %v1094 = vpack.c.bf16 %v1062, %v1060
    %v1095 = vld [vmem:[%s5] sm:$0xf]
    %v1096 = vld [vmem:[%s5 + $0x4] sm:$0xf]
    %v1097 = vld [vmem:[%s5 + $0x8] sm:$0xf]
    %v1098 = vld [vmem:[%s5 + $0xc] sm:$0xf]
    %v1099 = vld [vmem:[%s5 + $0x10] sm:$0xf]
    %v1100 = vld [vmem:[%s5 + $0x14] sm:$0xf]
    %v1101 = vld [vmem:[%s5 + $0x18] sm:$0xf]
    %v1102 = vld [vmem:[%s5 + $0x1c] sm:$0xf]
    %v1103 = vld [vmem:[%s5 + $0x20] sm:$0xf]
    %v1104 = vld [vmem:[%s5 + $0x24] sm:$0xf]
    %v1105 = vld [vmem:[%s5 + $0x28] sm:$0xf]
    %v1106 = vld [vmem:[%s5 + $0x2c] sm:$0xf]
    %v1107 = vld [vmem:[%s5 + $0x30] sm:$0xf]
    %v1108 = vld [vmem:[%s5 + $0x34] sm:$0xf]
    %v1109 = vld [vmem:[%s5 + $0x38] sm:$0xf]
    %v1110 = vld [vmem:[%s5 + $0x3c] sm:$0xf]
    %v1111 = vld [vmem:[%s5 + $0x40] sm:$0xf]
    %v1112 = vld [vmem:[%s5 + $0x44] sm:$0xf]
    %v1113 = vld [vmem:[%s5 + $0x48] sm:$0xf]
    %v1114 = vld [vmem:[%s5 + $0x4c] sm:$0xf]
    %v1115 = vld [vmem:[%s5 + $0x50] sm:$0xf]
    %v1116 = vld [vmem:[%s5 + $0x54] sm:$0xf]
    %v1117 = vld [vmem:[%s5 + $0x58] sm:$0xf]
    %v1118 = vld [vmem:[%s5 + $0x5c] sm:$0xf]
    %v1119 = vld [vmem:[%s5 + $0x60] sm:$0xf]
    %v1120 = vld [vmem:[%s5 + $0x64] sm:$0xf]
    %v1121 = vld [vmem:[%s5 + $0x68] sm:$0xf]
    %v1122 = vld [vmem:[%s5 + $0x6c] sm:$0xf]
    %v1123 = vld [vmem:[%s5 + $0x70] sm:$0xf]
    %v1124 = vld [vmem:[%s5 + $0x74] sm:$0xf]
    %v1125 = vld [vmem:[%s5 + $0x78] sm:$0xf]
    %v1126 = vld [vmem:[%s5 + $0x7c] sm:$0xf]
    %v1127 = vld [vmem:[%s6] sm:$0x1]
    %v1129 = vlaneseq
    %v1130 = vshrl.u32 %v1129, 7
    %v1131 = vsub.s32 0, %v1130
    %v1132 = vrot.slane %v1127, %v1131
    %v1166 = vunpack.c.l.b16 %v1095
    %v1167 = vunpack.c.l.b16 %v1096
    %v1168 = vunpack.c.l.b16 %v1097
    %v1169 = vunpack.c.l.b16 %v1098
    %v1170 = vunpack.c.l.b16 %v1099
    %v1171 = vunpack.c.l.b16 %v1100
    %v1172 = vunpack.c.l.b16 %v1101
    %v1173 = vunpack.c.l.b16 %v1102
    %v1174 = vunpack.c.l.b16 %v1103
    %v1175 = vunpack.c.l.b16 %v1104
    %v1176 = vunpack.c.l.b16 %v1105
    %v1177 = vunpack.c.l.b16 %v1106
    %v1178 = vunpack.c.l.b16 %v1107
    %v1179 = vunpack.c.l.b16 %v1108
    %v1180 = vunpack.c.l.b16 %v1109
    %v1181 = vunpack.c.l.b16 %v1110
    %v1182 = vunpack.c.l.b16 %v1111
    %v1183 = vunpack.c.l.b16 %v1112
    %v1184 = vunpack.c.l.b16 %v1113
    %v1185 = vunpack.c.l.b16 %v1114
    %v1186 = vunpack.c.l.b16 %v1115
    %v1187 = vunpack.c.l.b16 %v1116
    %v1188 = vunpack.c.l.b16 %v1117
    %v1189 = vunpack.c.l.b16 %v1118
    %v1190 = vunpack.c.l.b16 %v1119
    %v1191 = vunpack.c.l.b16 %v1120
    %v1192 = vunpack.c.l.b16 %v1121
    %v1193 = vunpack.c.l.b16 %v1122
    %v1194 = vunpack.c.l.b16 %v1123
    %v1195 = vunpack.c.l.b16 %v1124
    %v1196 = vunpack.c.l.b16 %v1125
    %v1197 = vunpack.c.l.b16 %v1126
    %v1198 = vpack.c.b16 %v1167, %v1166
    %v1199 = vpack.c.b16 %v1169, %v1168
    %v1200 = vpack.c.b16 %v1171, %v1170
    %v1201 = vpack.c.b16 %v1173, %v1172
    %v1202 = vpack.c.b16 %v1175, %v1174
    %v1203 = vpack.c.b16 %v1177, %v1176
    %v1204 = vpack.c.b16 %v1179, %v1178
    %v1205 = vpack.c.b16 %v1181, %v1180
    %v1206 = vpack.c.b16 %v1183, %v1182
    %v1207 = vpack.c.b16 %v1185, %v1184
    %v1208 = vpack.c.b16 %v1187, %v1186
    %v1209 = vpack.c.b16 %v1189, %v1188
    %v1210 = vpack.c.b16 %v1191, %v1190
    %v1211 = vpack.c.b16 %v1193, %v1192
    %v1212 = vpack.c.b16 %v1195, %v1194
    %v1213 = vpack.c.b16 %v1197, %v1196
    %1230 = vmatprep.subr.bf16.mxu0 0
    %1231 = vmatpush1.bf16.msra.mxu0 %v1205
    %1232 = vmatprep.subr.bf16.mxu0 0
    %1233 = vmatpush1.bf16.msra.mxu0 %v1204
    %1234 = vmatprep.subr.bf16.mxu0 0
    %1235 = vmatpush1.bf16.msra.mxu0 %v1203
    %1236 = vmatprep.subr.bf16.mxu0 0
    %1237 = vmatpush1.bf16.msra.mxu0 %v1202
    %1238 = vmatprep.subr.bf16.mxu0 0
    %1239 = vmatpush1.bf16.msra.mxu0 %v1201
    %1240 = vmatprep.subr.bf16.mxu0 0
    %1241 = vmatpush1.bf16.msra.mxu0 %v1200
    %1242 = vmatprep.subr.bf16.mxu0 0
    %1243 = vmatpush1.bf16.msra.mxu0 %v1199
    %1244 = vmatprep.subr.bf16.mxu0 0
    %1245 = vmatpush1.bf16.msra.mxu0 %v1198
    %1246 = vmatprep.subr.bf16.mxu0 0
    %1247 = vmatpush2.bf16.msra.mxu0 %v1213
    %1248 = vmatprep.subr.bf16.mxu0 0
    %1249 = vmatpush2.bf16.msra.mxu0 %v1212
    %1250 = vmatprep.subr.bf16.mxu0 0
    %1251 = vmatpush2.bf16.msra.mxu0 %v1211
    %1252 = vmatprep.subr.bf16.mxu0 0
    %1253 = vmatpush2.bf16.msra.mxu0 %v1210
    %1254 = vmatprep.subr.bf16.mxu0 0
    %1255 = vmatpush2.bf16.msra.mxu0 %v1209
    %1256 = vmatprep.subr.bf16.mxu0 0
    %1257 = vmatpush2.bf16.msra.mxu0 %v1208
    %1258 = vmatprep.subr.bf16.mxu0 0
    %1259 = vmatpush2.bf16.msra.mxu0 %v1207
    %1260 = vmatprep.subr.bf16.mxu0 0
    %1261 = vmatpush2.bf16.msra.mxu0 %v1206
    %1262 = vmatprep.mubr.bf16.mxu0 %v1064
    %1263 = vmatmul.mubr.bf16.gmra.mxu0 %v1063
    %v1264 = vpop.f32.mrf.mxu0
    %v1265 = vadd.f32 %v1132, %v1264
    %v1266 = vpop.f32.mrf.mxu0
    %v1267 = vpop.f32.mrf.mxu0
    %v1268 = vadd.f32 %v1132, %v1267
    %v1269 = vpop.f32.mrf.mxu0
    %1270 = vmatprep.mubr.bf16.mxu0 %v1066
    %1271 = vmatmul.mubr.bf16.gmra.mxu0 %v1065
    %v1272 = vpop.f32.mrf.mxu0
    %v1273 = vadd.f32 %v1132, %v1272
    %v1274 = vpop.f32.mrf.mxu0
    %v1275 = vpop.f32.mrf.mxu0
    %v1276 = vadd.f32 %v1132, %v1275
    %v1277 = vpop.f32.mrf.mxu0
    %1278 = vmatprep.mubr.bf16.mxu0 %v1068
    %1279 = vmatmul.mubr.bf16.gmra.mxu0 %v1067
    %v1280 = vpop.f32.mrf.mxu0
    %v1281 = vadd.f32 %v1132, %v1280
    %v1282 = vpop.f32.mrf.mxu0
    %v1283 = vpop.f32.mrf.mxu0
    %v1284 = vadd.f32 %v1132, %v1283
    %v1285 = vpop.f32.mrf.mxu0
    %1286 = vmatprep.mubr.bf16.mxu0 %v1070
    %1287 = vmatmul.mubr.bf16.gmra.mxu0 %v1069
    %v1288 = vpop.f32.mrf.mxu0
    %v1289 = vadd.f32 %v1132, %v1288
    %v1290 = vpop.f32.mrf.mxu0
    %v1291 = vpop.f32.mrf.mxu0
    %v1292 = vadd.f32 %v1132, %v1291
    %v1293 = vpop.f32.mrf.mxu0
    %1294 = vmatprep.mubr.bf16.mxu0 %v1072
    %1295 = vmatmul.mubr.bf16.gmra.mxu0 %v1071
    %v1296 = vpop.f32.mrf.mxu0
    %v1297 = vadd.f32 %v1132, %v1296
    %v1298 = vpop.f32.mrf.mxu0
    %v1299 = vpop.f32.mrf.mxu0
    %v1300 = vadd.f32 %v1132, %v1299
    %v1301 = vpop.f32.mrf.mxu0
    %1302 = vmatprep.mubr.bf16.mxu0 %v1074
    %1303 = vmatmul.mubr.bf16.gmra.mxu0 %v1073
    %v1304 = vpop.f32.mrf.mxu0
    %v1305 = vadd.f32 %v1132, %v1304
    %v1306 = vpop.f32.mrf.mxu0
    %v1307 = vpop.f32.mrf.mxu0
    %v1308 = vadd.f32 %v1132, %v1307
    %v1309 = vpop.f32.mrf.mxu0
    %1310 = vmatprep.mubr.bf16.mxu0 %v1076
    %1311 = vmatmul.mubr.bf16.gmra.mxu0 %v1075
    %v1312 = vpop.f32.mrf.mxu0
    %v1313 = vadd.f32 %v1132, %v1312
    %v1314 = vpop.f32.mrf.mxu0
    %v1315 = vpop.f32.mrf.mxu0
    %v1316 = vadd.f32 %v1132, %v1315
    %v1317 = vpop.f32.mrf.mxu0
    %1318 = vmatprep.mubr.bf16.mxu0 %v1078
    %1319 = vmatmul.mubr.bf16.gmra.mxu0 %v1077
    %v1320 = vpop.f32.mrf.mxu0
    %v1321 = vadd.f32 %v1132, %v1320
    %v1322 = vpop.f32.mrf.mxu0
    %v1323 = vpop.f32.mrf.mxu0
    %v1324 = vadd.f32 %v1132, %v1323
    %v1325 = vpop.f32.mrf.mxu0
    %1326 = vmatprep.mubr.bf16.mxu0 %v1080
    %1327 = vmatmul.mubr.bf16.gmra.mxu0 %v1079
    %v1328 = vpop.f32.mrf.mxu0
    %v1329 = vadd.f32 %v1132, %v1328
    %v1330 = vpop.f32.mrf.mxu0
    %v1331 = vpop.f32.mrf.mxu0
    %v1332 = vadd.f32 %v1132, %v1331
    %v1333 = vpop.f32.mrf.mxu0
    %1334 = vmatprep.mubr.bf16.mxu0 %v1082
    %1335 = vmatmul.mubr.bf16.gmra.mxu0 %v1081
    %v1336 = vpop.f32.mrf.mxu0
    %v1337 = vadd.f32 %v1132, %v1336
    %v1338 = vpop.f32.mrf.mxu0
    %v1339 = vpop.f32.mrf.mxu0
    %v1340 = vadd.f32 %v1132, %v1339
    %v1341 = vpop.f32.mrf.mxu0
    %1342 = vmatprep.mubr.bf16.mxu0 %v1084
    %1343 = vmatmul.mubr.bf16.gmra.mxu0 %v1083
    %v1344 = vpop.f32.mrf.mxu0
    %v1345 = vadd.f32 %v1132, %v1344
    %v1346 = vpop.f32.mrf.mxu0
    %v1347 = vpop.f32.mrf.mxu0
    %v1348 = vadd.f32 %v1132, %v1347
    %v1349 = vpop.f32.mrf.mxu0
    %1350 = vmatprep.mubr.bf16.mxu0 %v1086
    %1351 = vmatmul.mubr.bf16.gmra.mxu0 %v1085
    %v1352 = vpop.f32.mrf.mxu0
    %v1353 = vadd.f32 %v1132, %v1352
    %v1354 = vpop.f32.mrf.mxu0
    %v1355 = vpop.f32.mrf.mxu0
    %v1356 = vadd.f32 %v1132, %v1355
    %v1357 = vpop.f32.mrf.mxu0
    %1358 = vmatprep.mubr.bf16.mxu0 %v1088
    %1359 = vmatmul.mubr.bf16.gmra.mxu0 %v1087
    %v1360 = vpop.f32.mrf.mxu0
    %v1361 = vadd.f32 %v1132, %v1360
    %v1362 = vpop.f32.mrf.mxu0
    %v1363 = vpop.f32.mrf.mxu0
    %v1364 = vadd.f32 %v1132, %v1363
    %v1365 = vpop.f32.mrf.mxu0
    %1366 = vmatprep.mubr.bf16.mxu0 %v1090
    %1367 = vmatmul.mubr.bf16.gmra.mxu0 %v1089
    %v1368 = vpop.f32.mrf.mxu0
    %v1369 = vadd.f32 %v1132, %v1368
    %v1370 = vpop.f32.mrf.mxu0
    %v1371 = vpop.f32.mrf.mxu0
    %v1372 = vadd.f32 %v1132, %v1371
    %v1373 = vpop.f32.mrf.mxu0
    %1374 = vmatprep.mubr.bf16.mxu0 %v1092
    %1375 = vmatmul.mubr.bf16.gmra.mxu0 %v1091
    %v1376 = vpop.f32.mrf.mxu0
    %v1377 = vadd.f32 %v1132, %v1376
    %v1378 = vpop.f32.mrf.mxu0
    %v1379 = vpop.f32.mrf.mxu0
    %v1380 = vadd.f32 %v1132, %v1379
    %v1381 = vpop.f32.mrf.mxu0
    %1382 = vmatprep.mubr.bf16.mxu0 %v1094
    %1383 = vmatmul.mubr.bf16.gmra.mxu0 %v1093
    %v1384 = vpop.f32.mrf.mxu0
    %v1385 = vadd.f32 %v1132, %v1384
    %v1386 = vpop.f32.mrf.mxu0
    %v1387 = vpop.f32.mrf.mxu0
    %v1388 = vadd.f32 %v1132, %v1387
    %v1389 = vpop.f32.mrf.mxu0
    %1390 = vdwg.mxu0
    %v1391 = vmax.f32 %v1265, 0.0
    %v1392 = vmax.f32 %v1268, 0.0
    %v1393 = vmax.f32 %v1273, 0.0
    %v1394 = vmax.f32 %v1276, 0.0
    %v1395 = vmax.f32 %v1281, 0.0
    %v1396 = vmax.f32 %v1284, 0.0
    %v1397 = vmax.f32 %v1289, 0.0
    %v1398 = vmax.f32 %v1292, 0.0
    %v1399 = vmax.f32 %v1297, 0.0
    %v1400 = vmax.f32 %v1300, 0.0
    %v1401 = vmax.f32 %v1305, 0.0
    %v1402 = vmax.f32 %v1308, 0.0
    %v1403 = vmax.f32 %v1313, 0.0
    %v1404 = vmax.f32 %v1316, 0.0
    %v1405 = vmax.f32 %v1321, 0.0
    %v1406 = vmax.f32 %v1324, 0.0
    %v1407 = vmax.f32 %v1329, 0.0
    %v1408 = vmax.f32 %v1332, 0.0
    %v1409 = vmax.f32 %v1337, 0.0
    %v1410 = vmax.f32 %v1340, 0.0
    %v1411 = vmax.f32 %v1345, 0.0
    %v1412 = vmax.f32 %v1348, 0.0
    %v1413 = vmax.f32 %v1353, 0.0
    %v1414 = vmax.f32 %v1356, 0.0
    %v1415 = vmax.f32 %v1361, 0.0
    %v1416 = vmax.f32 %v1364, 0.0
    %v1417 = vmax.f32 %v1369, 0.0
    %v1418 = vmax.f32 %v1372, 0.0
    %v1419 = vmax.f32 %v1377, 0.0
    %v1420 = vmax.f32 %v1380, 0.0
    %v1421 = vmax.f32 %v1385, 0.0
    %v1422 = vmax.f32 %v1388, 0.0
    %v1423 = vld [vmem:[%s7] sm:$0x1]
    %v1424 = vpack.c.bf16 %v1392, %v1391
    %v1425 = vpack.c.bf16 %v1394, %v1393
    %v1426 = vpack.c.bf16 %v1396, %v1395
    %v1427 = vpack.c.bf16 %v1398, %v1397
    %v1428 = vpack.c.bf16 %v1400, %v1399
    %v1429 = vpack.c.bf16 %v1402, %v1401
    %v1430 = vpack.c.bf16 %v1404, %v1403
    %v1431 = vpack.c.bf16 %v1406, %v1405
    %v1432 = vpack.c.bf16 %v1408, %v1407
    %v1433 = vpack.c.bf16 %v1410, %v1409
    %v1434 = vpack.c.bf16 %v1412, %v1411
    %v1435 = vpack.c.bf16 %v1414, %v1413
    %v1436 = vpack.c.bf16 %v1416, %v1415
    %v1437 = vpack.c.bf16 %v1418, %v1417
    %v1438 = vpack.c.bf16 %v1420, %v1419
    %v1439 = vpack.c.bf16 %v1422, %v1421
    %v1440 = vld [vmem:[#allocation2] sm:$0x1]
    %1442 = vset.pattern.permute.xlu0 0
    %1443 = vperm.xlu0 %1442, %v1440
    %v1444 = vpop.permute.xlu0 %1443
    %v1446 = vlaneseq
    %v1447 = vshrl.u32 %v1446, 7
    %v1448 = vsub.s32 0, %v1447
    %v1449 = vrot.slane %v1444, %v1448
    %1450 = vmatprep.subr.bf16.mxu0 0
    %1451 = vmatpush1.bf16.xpose.msra.mxu0 %v1431
    %1452 = vmatprep.subr.bf16.mxu0 0
    %1453 = vmatpush1.bf16.xpose.msra.mxu0 %v1430
    %1454 = vmatprep.subr.bf16.mxu0 0
    %1455 = vmatpush1.bf16.xpose.msra.mxu0 %v1429
    %1456 = vmatprep.subr.bf16.mxu0 0
    %1457 = vmatpush1.bf16.xpose.msra.mxu0 %v1428
    %1458 = vmatprep.subr.bf16.mxu0 0
    %1459 = vmatpush1.bf16.xpose.msra.mxu0 %v1427
    %1460 = vmatprep.subr.bf16.mxu0 0
    %1461 = vmatpush1.bf16.xpose.msra.mxu0 %v1426
    %1462 = vmatprep.subr.bf16.mxu0 0
    %1463 = vmatpush1.bf16.xpose.msra.mxu0 %v1425
    %1464 = vmatprep.subr.bf16.mxu0 0
    %1465 = vmatpush1.bf16.xpose.msra.mxu0 %v1424
    %1466 = vmatprep.subr.bf16.mxu0 0
    %1467 = vmatpush2.bf16.xpose.msra.mxu0 %v1439
    %1468 = vmatprep.subr.bf16.mxu0 0
    %1469 = vmatpush2.bf16.xpose.msra.mxu0 %v1438
    %1470 = vmatprep.subr.bf16.mxu0 0
    %1471 = vmatpush2.bf16.xpose.msra.mxu0 %v1437
    %1472 = vmatprep.subr.bf16.mxu0 0
    %1473 = vmatpush2.bf16.xpose.msra.mxu0 %v1436
    %1474 = vmatprep.subr.bf16.mxu0 0
    %1475 = vmatpush2.bf16.xpose.msra.mxu0 %v1435
    %1476 = vmatprep.subr.bf16.mxu0 0
    %1477 = vmatpush2.bf16.xpose.msra.mxu0 %v1434
    %1478 = vmatprep.subr.bf16.mxu0 0
    %1479 = vmatpush2.bf16.xpose.msra.mxu0 %v1433
    %1480 = vmatprep.subr.bf16.mxu0 0
    %1481 = vmatpush2.bf16.xpose.msra.mxu0 %v1432
    %1482 = vmatprep.mubr.bf16.mxu0 0
    %1483 = vmatmul.mubr.bf16.gmra.mxu0 %v1423
    %v1484 = vpop.f32.mrf.mxu0
    %v1485 = vadd.f32 %v1449, %v1484
    %v1486 = vpop.f32.mrf.mxu0
    %v1487 = vadd.f32 %v1449, %v1486
    %v1488 = vpop.f32.mrf.mxu0
    %v1489 = vpop.f32.mrf.mxu0
    %1490 = vdwg.mxu0
    %v1491 = vsub.f32 0.0, %v1485
    %v1492 = vsub.f32 0.0, %v1487
    %v1493 = vmul.f32 %v1491, 1.442695
    %v1494 = vpow.pop %v1493
    %v1495 = vmul.f32 %v1492, 1.442695
    %v1496 = vpow.pop %v1495
    %v1497 = vadd.f32 %v1494, 1.0
    %v1498 = vadd.f32 %v1496, 1.0
    %v1499 = vrcp.pop %v1497
    %v1500 = vrcp.pop %v1498
    %v1503 = vcombine.low %v1499, %v1500
    %v1505 = vunpack.c.l.s4 1966171168
    %v1506 = vunpack.c.0.s8 %v1505
    %v1507 = vlaneseq
    %v1508 = vshrl.u32 %v1507, 7
    %v1509 = vsub.s32 %v1506, %v1508
    %v1510 = vrot.slane %v1503, %v1509
    %v1512 = vunpack.c.l.s4 1966171168
    %v1513 = vunpack.c.0.s8 %v1512
    %v1514 = vlaneseq
    %v1515 = vshrl.u32 %v1514, 7
    %v1516 = vsub.s32 %v1513, %v1515
    %v1517 = vrot.slane %v1510, %v1516
    %v1519 = vlaneseq
    %vm1520 = vcmp.ge.s32.totalorder %v1519, 0
    %vm1521 = vcmp.lt.s32.totalorder %v1519, 256
    %vm1522 = vmand %vm1520, %vm1521
    %1523 = vst.msk [vmem:[#allocation3] sm:$0x3] %vm1522, %v1517
    // Predicated region
    $region38: #{tpu_custom_call.1} parent=1 // pred_check
      _
    $region39: #{tpu_custom_call.1} parent=1 // pred_check_branch
      %1525 = sbr.rel (0) target = $region41
    $region40: #{tpu_custom_call.1} parent=1 // pred_region
      %s1527 = ssub.s32 32, 32
      %1528 = vsyncadd [#allocation4], %s1527
      %s1530 = sshll.u32 [#allocation3], 4
      %s1531 = int_to_ptr.vmem [resolvable:$true] %s1530
      %1533 = dma.vmem_to_hbm [thread:$0]  %s1531, 32, %s9, [#allocation4]
    $region41: #{tpu_custom_call.1} parent=1 // pred_fallthru
      _
    // Predicated region
    $region42: #{tpu_custom_call.1} parent=1 // pred_check
      _
    $region43: #{tpu_custom_call.1} parent=1 // pred_check_branch
      %1535 = sbr.rel (0) target = $region45
    $region44: #{tpu_custom_call.1} parent=1 // pred_region
      %1536 = dma.done [#allocation4], 32
    $region45: #{tpu_custom_call.1} parent=1 // pred_fallthru
      _
    %1537 = vsyncpa [#allocation4], 1

</llo_original>
